<compile_context>
chip_gen: v6e
topology: v6e:2x2x1
jax: 0.10.0
libtpu: 0.0.40
codegen_flags: <defaults>
</compile_context>

<pallas_src>
import jax
import jax.numpy as jnp
import numpy as np
from jax.experimental import pallas as pl
from jax.experimental.pallas import tpu as pltpu

NUM_CLASSES = 10
INPUT_SIZE = 3 * 32 * 32  # 3072
H1 = 128
H2 = 64
OUT_PAD = 128           # lane-dense padded output width (>= NUM_CLASSES)
MAX_TILE_M = 512        # f32 x-tile double-buffered ~12 MiB; safe on v5e/v6e/v7x


def _round_up(x: int, m: int) -> int:
    return ((x + m - 1) // m) * m


def _mlp_kernel(x_ref, w1_ref, b1_ref, w2_ref, b2_ref, w3_ref, b3_ref, o_ref):
    """Fused 3-layer MLP on one (tile_m, INPUT_SIZE) batch tile.

    x arrives as f32 (straight from HBM) and is cast to bf16 in-kernel (free:
    VPU has huge slack and the cast hides under the input DMA). Matmul inputs
    are bf16, accumulation is f32; bias add + ReLU stay in f32.
    """
    x = x_ref[...].astype(jnp.bfloat16)  # fused f32->bf16 cast (no extra HBM pass)

    h1 = jnp.dot(x, w1_ref[...], preferred_element_type=jnp.float32) + b1_ref[...]
    h1 = jnp.maximum(h1, 0.0).astype(jnp.bfloat16)

    h2 = jnp.dot(h1, w2_ref[...], preferred_element_type=jnp.float32) + b2_ref[...]
    h2 = jnp.maximum(h2, 0.0).astype(jnp.bfloat16)

    logits = jnp.dot(h2, w3_ref[...], preferred_element_type=jnp.float32) + b3_ref[...]
    o_ref[...] = logits.astype(o_ref.dtype)


def _init_params(key):
    """Deterministic init mimicking nn.Linear defaults (uniform +-1/sqrt(fan_in)).

    Weights stored transposed relative to PyTorch: (in_features, out_features),
    cast to bf16 (halves weight HBM traffic, native MXU rate). W3/b3 are
    zero-padded 10 -> 128 output columns so the output store is lane-dense.
    Biases stay f32 (the accumulate/bias/ReLU path is f32).
    """
    ks = jax.random.split(key, 6)

    def linear(kw, kb, fan_in, fan_out):
        bound = 1.0 / np.sqrt(fan_in)
        w = jax.random.uniform(kw, (fan_in, fan_out), jnp.float32, -bound, bound)
        b = jax.random.uniform(kb, (1, fan_out), jnp.float32, -bound, bound)
        return w, b

    w1, b1 = linear(ks[0], ks[1], INPUT_SIZE, H1)
    w2, b2 = linear(ks[2], ks[3], H1, H2)
    w3, b3 = linear(ks[4], ks[5], H2, NUM_CLASSES)

    # Pad the last layer to a lane-dense 128-wide output (zeros in cols 10..127).
    w3p = jnp.pad(w3, ((0, 0), (0, OUT_PAD - NUM_CLASSES)))
    b3p = jnp.pad(b3, ((0, 0), (0, OUT_PAD - NUM_CLASSES)))

    return (w1.astype(jnp.bfloat16), b1,
            w2.astype(jnp.bfloat16), b2,
            w3p.astype(jnp.bfloat16), b3p)


def simple_test_model_forward(inputs, params):
    """JAX/Pallas equivalent of SimpleTestModel.forward.

    inputs: dict with 'image' of shape (B, C, H, W) or (C, H, W), float32.
    returns: dict with 'logits' of shape (B, NUM_CLASSES), float32.
    """
    image = inputs["image"]
    if image.ndim == 3:
        image = image[None, ...]  # unsqueeze(0)
    batch = image.shape[0]

    # nn.Flatten(): flatten all dims except batch (row-major, matches torch).
    # Free metadata reshape; keep f32 — the bf16 cast happens inside the kernel.
    x = image.reshape(batch, -1).astype(jnp.float32)
    assert x.shape[1] == INPUT_SIZE, f"expected {INPUT_SIZE} features, got {x.shape[1]}"

    w1, b1, w2, b2, w3p, b3p = params

    # Batch tiling: at least 2 grid steps for mid/large batches (keeps both v7x
    # TensorCores busy and balances the tail), capped at MAX_TILE_M, and a
    # minimum of 8 rows (f32 sublane packing). No wrapper pad: Pallas masks the
    # ragged last block; tail rows are independent and never read back.
    tile_m = min(MAX_TILE_M, max(8, _round_up(pl.cdiv(batch, 2), 8)))
    grid = (pl.cdiv(batch, tile_m),)

    flops = 2 * batch * (INPUT_SIZE * H1 + H1 * H2 + H2 * OUT_PAD)
    bytes_accessed = (
        batch * INPUT_SIZE * 4                        # f32 activations in
        + (w1.size + w2.size + w3p.size) * 2          # bf16 weights
        + (b1.size + b2.size + b3p.size) * 4          # f32 biases
        + batch * OUT_PAD * 4                         # f32 logits out
    )

    out = pl.pallas_call(
        _mlp_kernel,
        out_shape=jax.ShapeDtypeStruct((batch, OUT_PAD), jnp.float32),
        grid=grid,
        in_specs=[
            pl.BlockSpec((tile_m, INPUT_SIZE), lambda i: (i, 0)),
            # Weight / bias blocks: constant block index -> VMEM-resident, and
            # single-buffered (a second buffer would be pure VMEM waste).
            pl.BlockSpec((INPUT_SIZE, H1), lambda i: (0, 0),
                         pipeline_mode=pl.Buffered(1)),
            pl.BlockSpec((1, H1), lambda i: (0, 0),
                         pipeline_mode=pl.Buffered(1)),
            pl.BlockSpec((H1, H2), lambda i: (0, 0),
                         pipeline_mode=pl.Buffered(1)),
            pl.BlockSpec((1, H2), lambda i: (0, 0),
                         pipeline_mode=pl.Buffered(1)),
            pl.BlockSpec((H2, OUT_PAD), lambda i: (0, 0),
                         pipeline_mode=pl.Buffered(1)),
            pl.BlockSpec((1, OUT_PAD), lambda i: (0, 0),
                         pipeline_mode=pl.Buffered(1)),
        ],
        out_specs=pl.BlockSpec((tile_m, OUT_PAD), lambda i: (i, 0)),
        compiler_params=pltpu.CompilerParams(
            dimension_semantics=("parallel",),
            vmem_limit_bytes=32 << 20,   # v5e default is 16 MiB; f32 x-tiles need ~14 MiB
        ),
        cost_estimate=pl.CostEstimate(
            flops=flops, transcendentals=0, bytes_accessed=bytes_accessed),
    )(x, w1, b1, w2, b2, w3p, b3p)

    # Drop padded logit columns (10..127 are zero-weight columns).
    return {"logits": out[:, :NUM_CLASSES]}


def _reference_forward(inputs, params):
    """Pure-JAX reference mirroring the kernel's bf16-in / f32-accumulate math."""
    image = inputs["image"]
    if image.ndim == 3:
        image = image[None, ...]
    x = image.reshape(image.shape[0], -1).astype(jnp.float32).astype(jnp.bfloat16)
    w1, b1, w2, b2, w3p, b3p = params
    h1 = jnp.maximum(jnp.dot(x, w1, preferred_element_type=jnp.float32) + b1, 0.0)
    h2 = jnp.maximum(
        jnp.dot(h1.astype(jnp.bfloat16), w2, preferred_element_type=jnp.float32) + b2, 0.0)
    logits = jnp.dot(h2.astype(jnp.bfloat16), w3p, preferred_element_type=jnp.float32) + b3p
    return {"logits": logits[:, :NUM_CLASSES]}


if __name__ == "__main__":
    key = jax.random.PRNGKey(0)
    k_param, k_img1, k_img2 = jax.random.split(key, 3)

    params = _init_params(k_param)

    # Case 1: tiny batch (B=2), CIFAR-like shape implied by input_size = 3*32*32.
    image_small = jax.random.normal(k_img1, (2, 3, 32, 32), dtype=jnp.float32)
    out_small = simple_test_model_forward({"image": image_small}, params)
    logits_small = jax.block_until_ready(out_small["logits"])
    ref_small = jax.block_until_ready(
        _reference_forward({"image": image_small}, params)["logits"])
    np.testing.assert_allclose(np.asarray(logits_small), np.asarray(ref_small),
                               rtol=1e-2, atol=1e-2)
    assert logits_small.shape == (2, NUM_CLASSES)

    # Case 2: non-tile-multiple batch exercising the 2-step grid + ragged tail.
    image_big = jax.random.normal(k_img2, (37, 3, 32, 32), dtype=jnp.float32)
    out_big = simple_test_model_forward({"image": image_big}, params)
    logits_big = jax.block_until_ready(out_big["logits"])
    ref_big = jax.block_until_ready(
        _reference_forward({"image": image_big}, params)["logits"])
    np.testing.assert_allclose(np.asarray(logits_big), np.asarray(ref_big),
                               rtol=1e-2, atol=1e-2)
    assert logits_big.shape == (37, NUM_CLASSES)

    print("KERNEL_OK")
</pallas_src>

<mosaic_0001>
module attributes {stable_mosaic.version = 11 : i64} {
  func.func @_mlp_kernel(%arg0: i32, %arg1: memref<8x3072xf32, #tpu.memory_space<vmem>>, %arg2: memref<3072x128xbf16, #tpu.memory_space<vmem>>, %arg3: memref<1x128xf32, #tpu.memory_space<vmem>>, %arg4: memref<128x64xbf16, #tpu.memory_space<vmem>>, %arg5: memref<1x64xf32, #tpu.memory_space<vmem>>, %arg6: memref<64x128xbf16, #tpu.memory_space<vmem>>, %arg7: memref<1x128xf32, #tpu.memory_space<vmem>>, %arg8: memref<8x128xf32, #tpu.memory_space<vmem>>) attributes {dimension_semantics = [#tpu.dimension_semantics<parallel>], iteration_bounds = array<i64: 1>, scalar_prefetch = 0 : i64, scratch_operands = 0 : i64, tpu.core_type = #tpu.core_type<tc>, window_params = [{transform_indices = @transform_0, window_bounds = array<i64: 8, 3072>}, {pipeline_mode = #tpu.pipeline_mode<synchronous>, transform_indices = @transform_1, window_bounds = array<i64: 3072, 128>}, {pipeline_mode = #tpu.pipeline_mode<synchronous>, transform_indices = @transform_2, window_bounds = array<i64: 1, 128>}, {pipeline_mode = #tpu.pipeline_mode<synchronous>, transform_indices = @transform_3, window_bounds = array<i64: 128, 64>}, {pipeline_mode = #tpu.pipeline_mode<synchronous>, transform_indices = @transform_4, window_bounds = array<i64: 1, 64>}, {pipeline_mode = #tpu.pipeline_mode<synchronous>, transform_indices = @transform_5, window_bounds = array<i64: 64, 128>}, {pipeline_mode = #tpu.pipeline_mode<synchronous>, transform_indices = @transform_6, window_bounds = array<i64: 1, 128>}, {transform_indices = @transform_7, window_bounds = array<i64: 8, 128>}]} {
    %c0 = arith.constant 0 : index
    %c0_0 = arith.constant 0 : index
    %0 = vector.load %arg1[%c0, %c0_0] : memref<8x3072xf32, #tpu.memory_space<vmem>>, vector<8x3072xf32>
    %1 = arith.truncf %0 : vector<8x3072xf32> to vector<8x3072xbf16>
    %c0_1 = arith.constant 0 : index
    %c0_2 = arith.constant 0 : index
    %2 = vector.load %arg2[%c0_1, %c0_2] : memref<3072x128xbf16, #tpu.memory_space<vmem>>, vector<3072x128xbf16>
    %cst = arith.constant dense<0.000000e+00> : vector<8x128xf32>
    %3 = tpu.matmul %1, %2, %cst {dimension_numbers = #tpu.dot_dimension_numbers<[1], [0], [0], [1], [0, 0, 1, 1], [], []>} : vector<8x3072xbf16>, vector<3072x128xbf16>, vector<8x128xf32> -> vector<8x128xf32>
    %c0_3 = arith.constant 0 : index
    %c0_4 = arith.constant 0 : index
    %4 = vector.load %arg3[%c0_3, %c0_4] : memref<1x128xf32, #tpu.memory_space<vmem>>, vector<1x128xf32>
    %5 = vector.broadcast %4 : vector<1x128xf32> to vector<8x128xf32>
    %6 = arith.addf %3, %5 : vector<8x128xf32>
    %cst_5 = arith.constant 0.000000e+00 : f32
    %7 = vector.broadcast %cst_5 : f32 to vector<8x128xf32>
    %8 = arith.maximumf %6, %7 : vector<8x128xf32>
    %9 = arith.truncf %8 : vector<8x128xf32> to vector<8x128xbf16>
    %c0_6 = arith.constant 0 : index
    %c0_7 = arith.constant 0 : index
    %10 = vector.load %arg4[%c0_6, %c0_7] : memref<128x64xbf16, #tpu.memory_space<vmem>>, vector<128x64xbf16>
    %cst_8 = arith.constant dense<0.000000e+00> : vector<8x64xf32>
    %11 = tpu.matmul %9, %10, %cst_8 {dimension_numbers = #tpu.dot_dimension_numbers<[1], [0], [0], [1], [0, 0, 1, 1], [], []>} : vector<8x128xbf16>, vector<128x64xbf16>, vector<8x64xf32> -> vector<8x64xf32>
    %c0_9 = arith.constant 0 : index
    %c0_10 = arith.constant 0 : index
    %12 = vector.load %arg5[%c0_9, %c0_10] : memref<1x64xf32, #tpu.memory_space<vmem>>, vector<1x64xf32>
    %13 = vector.broadcast %12 : vector<1x64xf32> to vector<8x64xf32>
    %14 = arith.addf %11, %13 : vector<8x64xf32>
    %cst_11 = arith.constant 0.000000e+00 : f32
    %15 = vector.broadcast %cst_11 : f32 to vector<8x64xf32>
    %16 = arith.maximumf %14, %15 : vector<8x64xf32>
    %17 = arith.truncf %16 : vector<8x64xf32> to vector<8x64xbf16>
    %c0_12 = arith.constant 0 : index
    %c0_13 = arith.constant 0 : index
    %18 = vector.load %arg6[%c0_12, %c0_13] : memref<64x128xbf16, #tpu.memory_space<vmem>>, vector<64x128xbf16>
    %cst_14 = arith.constant dense<0.000000e+00> : vector<8x128xf32>
    %19 = tpu.matmul %17, %18, %cst_14 {dimension_numbers = #tpu.dot_dimension_numbers<[1], [0], [0], [1], [0, 0, 1, 1], [], []>} : vector<8x64xbf16>, vector<64x128xbf16>, vector<8x128xf32> -> vector<8x128xf32>
    %c0_15 = arith.constant 0 : index
    %c0_16 = arith.constant 0 : index
    %20 = vector.load %arg7[%c0_15, %c0_16] : memref<1x128xf32, #tpu.memory_space<vmem>>, vector<1x128xf32>
    %21 = vector.broadcast %20 : vector<1x128xf32> to vector<8x128xf32>
    %22 = arith.addf %19, %21 : vector<8x128xf32>
    %c0_17 = arith.constant 0 : index
    %c0_18 = arith.constant 0 : index
    %23 = vector.load %arg8[%c0_17, %c0_18] : memref<8x128xf32, #tpu.memory_space<vmem>>, vector<8x128xf32>
    tpu.vector_store %arg8[%c0_17, %c0_18], %22 {strides = array<i32>} : memref<8x128xf32, #tpu.memory_space<vmem>>, vector<8x128xf32>,
    return
  }
  func.func @transform_0(%arg0: i32) -> (i32, i32) {
    %c0_i32 = arith.constant 0 : i32
    %c0_i32_0 = arith.constant 0 : i32
    return %arg0, %c0_i32 : i32, i32
  }
  func.func @transform_1(%arg0: i32) -> (i32, i32) {
    %c0_i32 = arith.constant 0 : i32
    %c0_i32_0 = arith.constant 0 : i32
    %c0_i32_1 = arith.constant 0 : i32
    return %c0_i32, %c0_i32_0 : i32, i32
  }
  func.func @transform_2(%arg0: i32) -> (i32, i32) {
    %c0_i32 = arith.constant 0 : i32
    %c0_i32_0 = arith.constant 0 : i32
    %c0_i32_1 = arith.constant 0 : i32
    return %c0_i32, %c0_i32_0 : i32, i32
  }
  func.func @transform_3(%arg0: i32) -> (i32, i32) {
    %c0_i32 = arith.constant 0 : i32
    %c0_i32_0 = arith.constant 0 : i32
    %c0_i32_1 = arith.constant 0 : i32
    return %c0_i32, %c0_i32_0 : i32, i32
  }
  func.func @transform_4(%arg0: i32) -> (i32, i32) {
    %c0_i32 = arith.constant 0 : i32
    %c0_i32_0 = arith.constant 0 : i32
    %c0_i32_1 = arith.constant 0 : i32
    return %c0_i32, %c0_i32_0 : i32, i32
  }
  func.func @transform_5(%arg0: i32) -> (i32, i32) {
    %c0_i32 = arith.constant 0 : i32
    %c0_i32_0 = arith.constant 0 : i32
    %c0_i32_1 = arith.constant 0 : i32
    return %c0_i32, %c0_i32_0 : i32, i32
  }
  func.func @transform_6(%arg0: i32) -> (i32, i32) {
    %c0_i32 = arith.constant 0 : i32
    %c0_i32_0 = arith.constant 0 : i32
    %c0_i32_1 = arith.constant 0 : i32
    return %c0_i32, %c0_i32_0 : i32, i32
  }
  func.func @transform_7(%arg0: i32) -> (i32, i32) {
    %c0_i32 = arith.constant 0 : i32
    %c0_i32_0 = arith.constant 0 : i32
    return %arg0, %c0_i32 : i32, i32
  }
}

</mosaic_0001>

<llo_original>
// kernel: tpu_custom_call.1
$region0: #{tpu_custom_call.1}
  #allocation0 [shape = 'u32[]', space=smem, size = 0x4, offset = 0x4, fixed_abs, tag = 'smem constant byte address 0x4 - core index']
  #allocation1 [shape = 'u32[144,128]{1,0:T(1,128)}', space=vmem, size = 0x12000, scoped, tag = 'internal scratch']
  %s0 = inlined_call_operand.vmem [shape: f32[2,3072], index: 0, kind: input, shape index: {}]
  %s1 = inlined_call_operand.hbm [shape: bf16[3072,128], index: 1, kind: input, shape index: {}]
  %s2 = inlined_call_operand.vmem [shape: f32[1,128], index: 2, kind: input, shape index: {}]
  %s3 = inlined_call_operand.vmem [shape: bf16[128,64], index: 3, kind: input, shape index: {}]
  %s4 = inlined_call_operand.vmem [shape: f32[1,64], index: 4, kind: input, shape index: {}]
  %s5 = inlined_call_operand.vmem [shape: bf16[64,128], index: 5, kind: input, shape index: {}]
  %s6 = inlined_call_operand.vmem [shape: f32[1,128], index: 6, kind: input, shape index: {}]
  %s7 = inlined_call_operand.hbm [shape: f32[2,128], index: 7, kind: output, shape index: {}]
  %s8 = sld [smem:[#allocation0]]
  $region42: #{tpu_custom_call.1} parent=0
    _
  %s10 = ssub.s32 1, %s8
  %s11 = scalar_select 0, %s10, %s8
  $region1: #{tpu_custom_call.1} parent=0
    #allocation2 [shape = 'u8[786432]{0}', space=vmem, size = 0xc0000, scoped, tag = 'input window, operand 1, single buffered']
    #allocation3 [shape = 's32[1]{0}', space=sflag, size = 0x4, scoped, tag = 'scoped memory for tpu_custom_call.1']
    #allocation4 [shape = 's32[1]{0}', space=sflag, size = 0x4, scoped, tag = 'scoped memory for tpu_custom_call.1']
    #allocation5 [shape = 'u8[4096]{0}', space=vmem, size = 0x1000, scoped, tag = 'output window, operand 0, single buffered']
    %12 = vsyncpa [#allocation3], 0
    %13 = vsyncpa [#allocation4], 0
    // Predicated region
    $region2: #{tpu_custom_call.1} parent=1 // pred_check
      _
    $region3: #{tpu_custom_call.1} parent=1 // pred_check_branch
      %15 = sbr.rel (0) target = $region5
    $region4: #{tpu_custom_call.1} parent=1 // pred_region
      _
    $region5: #{tpu_custom_call.1} parent=1 // pred_fallthru
      _
    // Predicated region
    $region6: #{tpu_custom_call.1} parent=1 // pred_check
      _
    $region7: #{tpu_custom_call.1} parent=1 // pred_check_branch
      %17 = sbr.rel (0) target = $region9
    $region8: #{tpu_custom_call.1} parent=1 // pred_region
      %s19 = ssub.s32 24576, 24576
      %20 = vsyncadd [#allocation3], %s19
      %s21 = sshll.u32 [#allocation2], 4
      %s22 = int_to_ptr.vmem [resolvable:$true] %s21
      %27 = dma.hbm_to_vmem [thread:$0]  %s1, 24576, %s22, [#allocation3], 64, 64, 4
    $region9: #{tpu_custom_call.1} parent=1 // pred_fallthru
      _
    // Predicated region
    $region10: #{tpu_custom_call.1} parent=1 // pred_check
      _
    $region11: #{tpu_custom_call.1} parent=1 // pred_check_branch
      %29 = sbr.rel (0) target = $region13
    $region12: #{tpu_custom_call.1} parent=1 // pred_region
      _
    $region13: #{tpu_custom_call.1} parent=1 // pred_fallthru
      _
    // Predicated region
    $region14: #{tpu_custom_call.1} parent=1 // pred_check
      _
    $region15: #{tpu_custom_call.1} parent=1 // pred_check_branch
      %31 = sbr.rel (0) target = $region17
    $region16: #{tpu_custom_call.1} parent=1 // pred_region
      _
    $region17: #{tpu_custom_call.1} parent=1 // pred_fallthru
      _
    // Predicated region
    $region18: #{tpu_custom_call.1} parent=1 // pred_check
      _
    $region19: #{tpu_custom_call.1} parent=1 // pred_check_branch
      %33 = sbr.rel (0) target = $region21
    $region20: #{tpu_custom_call.1} parent=1 // pred_region
      _
    $region21: #{tpu_custom_call.1} parent=1 // pred_fallthru
      _
    // Predicated region
    $region22: #{tpu_custom_call.1} parent=1 // pred_check
      _
    $region23: #{tpu_custom_call.1} parent=1 // pred_check_branch
      %35 = sbr.rel (0) target = $region25
    $region24: #{tpu_custom_call.1} parent=1 // pred_region
      _
    $region25: #{tpu_custom_call.1} parent=1 // pred_fallthru
      _
    // Predicated region
    $region26: #{tpu_custom_call.1} parent=1 // pred_check
      _
    $region27: #{tpu_custom_call.1} parent=1 // pred_check_branch
      %37 = sbr.rel (0) target = $region29
    $region28: #{tpu_custom_call.1} parent=1 // pred_region
      _
    $region29: #{tpu_custom_call.1} parent=1 // pred_fallthru
      _
    // Predicated region
    $region30: #{tpu_custom_call.1} parent=1 // pred_check
      _
    $region31: #{tpu_custom_call.1} parent=1 // pred_check_branch
      %39 = sbr.rel (0) target = $region33
    $region32: #{tpu_custom_call.1} parent=1 // pred_region
      %40 = dma.done [#allocation3], 24576
    $region33: #{tpu_custom_call.1} parent=1 // pred_fallthru
      _
    %v42 = vld [vmem:[%s0] sm:$0xff]
    %v43 = vld [vmem:[%s0 + $0x8] sm:$0xff]
    %v44 = vld [vmem:[%s0 + $0x10] sm:$0xff]
    %v45 = vld [vmem:[%s0 + $0x18] sm:$0xff]
    %v46 = vld [vmem:[%s0 + $0x20] sm:$0xff]
    %v47 = vld [vmem:[%s0 + $0x28] sm:$0xff]
    %v48 = vld [vmem:[%s0 + $0x30] sm:$0xff]
    %v49 = vld [vmem:[%s0 + $0x38] sm:$0xff]
    %v50 = vld [vmem:[%s0 + $0x40] sm:$0xff]
    %v51 = vld [vmem:[%s0 + $0x48] sm:$0xff]
    %v52 = vld [vmem:[%s0 + $0x50] sm:$0xff]
    %v53 = vld [vmem:[%s0 + $0x58] sm:$0xff]
    %v54 = vld [vmem:[%s0 + $0x60] sm:$0xff]
    %v55 = vld [vmem:[%s0 + $0x68] sm:$0xff]
    %v56 = vld [vmem:[%s0 + $0x70] sm:$0xff]
    %v57 = vld [vmem:[%s0 + $0x78] sm:$0xff]
    %v58 = vld [vmem:[%s0 + $0x80] sm:$0xff]
    %v59 = vld [vmem:[%s0 + $0x88] sm:$0xff]
    %v60 = vld [vmem:[%s0 + $0x90] sm:$0xff]
    %v61 = vld [vmem:[%s0 + $0x98] sm:$0xff]
    %v62 = vld [vmem:[%s0 + $0xa0] sm:$0xff]
    %v63 = vld [vmem:[%s0 + $0xa8] sm:$0xff]
    %v64 = vld [vmem:[%s0 + $0xb0] sm:$0xff]
    %v65 = vld [vmem:[%s0 + $0xb8] sm:$0xff]
    %v90 = vcombine.low %v42, %v48
    %v91 = vcombine.high %v42, %v48
    %v92 = vcombine.low %v54, %v60
    %v93 = vcombine.high %v54, %v60
    %v95 = vunpack.c.l.s4 1983009808
    %v96 = vunpack.c.0.s8 %v95
    %v97 = vlaneseq
    %v98 = vshrl.u32 %v97, 7
    %v99 = vsub.s32 %v96, %v98
    %v100 = vrot.slane %v90, %v99
    %v102 = vunpack.c.l.s4 1983009808
    %v103 = vunpack.c.0.s8 %v102
    %v104 = vlaneseq
    %v105 = vshrl.u32 %v104, 7
    %v106 = vsub.s32 %v103, %v105
    %v107 = vrot.slane %v91, %v106
    %v109 = vunpack.c.l.s4 1983009808
    %v110 = vunpack.c.0.s8 %v109
    %v111 = vlaneseq
    %v112 = vshrl.u32 %v111, 7
    %v113 = vsub.s32 %v110, %v112
    %v114 = vrot.slane %v92, %v113
    %v116 = vunpack.c.l.s4 1983009808
    %v117 = vunpack.c.0.s8 %v116
    %v118 = vlaneseq
    %v119 = vshrl.u32 %v118, 7
    %v120 = vsub.s32 %v117, %v119
    %v121 = vrot.slane %v93, %v120
    %v122 = vcombine.low %v100, %v114
    %v123 = vcombine.high %v100, %v114
    %v124 = vcombine.low %v107, %v121
    %v125 = vcombine.high %v107, %v121
    %v126 = vcombine.low %v43, %v49
    %v127 = vcombine.high %v43, %v49
    %v128 = vcombine.low %v55, %v61
    %v129 = vcombine.high %v55, %v61
    %v131 = vunpack.c.l.s4 1983009808
    %v132 = vunpack.c.0.s8 %v131
    %v133 = vlaneseq
    %v134 = vshrl.u32 %v133, 7
    %v135 = vsub.s32 %v132, %v134
    %v136 = vrot.slane %v126, %v135
    %v138 = vunpack.c.l.s4 1983009808
    %v139 = vunpack.c.0.s8 %v138
    %v140 = vlaneseq
    %v141 = vshrl.u32 %v140, 7
    %v142 = vsub.s32 %v139, %v141
    %v143 = vrot.slane %v127, %v142
    %v145 = vunpack.c.l.s4 1983009808
    %v146 = vunpack.c.0.s8 %v145
    %v147 = vlaneseq
    %v148 = vshrl.u32 %v147, 7
    %v149 = vsub.s32 %v146, %v148
    %v150 = vrot.slane %v128, %v149
    %v152 = vunpack.c.l.s4 1983009808
    %v153 = vunpack.c.0.s8 %v152
    %v154 = vlaneseq
    %v155 = vshrl.u32 %v154, 7
    %v156 = vsub.s32 %v153, %v155
    %v157 = vrot.slane %v129, %v156
    %v158 = vcombine.low %v136, %v150
    %v159 = vcombine.high %v136, %v150
    %v160 = vcombine.low %v143, %v157
    %v161 = vcombine.high %v143, %v157
    %v162 = vcombine.low %v44, %v50
    %v163 = vcombine.high %v44, %v50
    %v164 = vcombine.low %v56, %v62
    %v165 = vcombine.high %v56, %v62
    %v167 = vunpack.c.l.s4 1983009808
    %v168 = vunpack.c.0.s8 %v167
    %v169 = vlaneseq
    %v170 = vshrl.u32 %v169, 7
    %v171 = vsub.s32 %v168, %v170
    %v172 = vrot.slane %v162, %v171
    %v174 = vunpack.c.l.s4 1983009808
    %v175 = vunpack.c.0.s8 %v174
    %v176 = vlaneseq
    %v177 = vshrl.u32 %v176, 7
    %v178 = vsub.s32 %v175, %v177
    %v179 = vrot.slane %v163, %v178
    %v181 = vunpack.c.l.s4 1983009808
    %v182 = vunpack.c.0.s8 %v181
    %v183 = vlaneseq
    %v184 = vshrl.u32 %v183, 7
    %v185 = vsub.s32 %v182, %v184
    %v186 = vrot.slane %v164, %v185
    %v188 = vunpack.c.l.s4 1983009808
    %v189 = vunpack.c.0.s8 %v188
    %v190 = vlaneseq
    %v191 = vshrl.u32 %v190, 7
    %v192 = vsub.s32 %v189, %v191
    %v193 = vrot.slane %v165, %v192
    %v194 = vcombine.low %v172, %v186
    %v195 = vcombine.high %v172, %v186
    %v196 = vcombine.low %v179, %v193
    %v197 = vcombine.high %v179, %v193
    %v198 = vcombine.low %v45, %v51
    %v199 = vcombine.high %v45, %v51
    %v200 = vcombine.low %v57, %v63
    %v201 = vcombine.high %v57, %v63
    %v203 = vunpack.c.l.s4 1983009808
    %v204 = vunpack.c.0.s8 %v203
    %v205 = vlaneseq
    %v206 = vshrl.u32 %v205, 7
    %v207 = vsub.s32 %v204, %v206
    %v208 = vrot.slane %v198, %v207
    %v210 = vunpack.c.l.s4 1983009808
    %v211 = vunpack.c.0.s8 %v210
    %v212 = vlaneseq
    %v213 = vshrl.u32 %v212, 7
    %v214 = vsub.s32 %v211, %v213
    %v215 = vrot.slane %v199, %v214
    %v217 = vunpack.c.l.s4 1983009808
    %v218 = vunpack.c.0.s8 %v217
    %v219 = vlaneseq
    %v220 = vshrl.u32 %v219, 7
    %v221 = vsub.s32 %v218, %v220
    %v222 = vrot.slane %v200, %v221
    %v224 = vunpack.c.l.s4 1983009808
    %v225 = vunpack.c.0.s8 %v224
    %v226 = vlaneseq
    %v227 = vshrl.u32 %v226, 7
    %v228 = vsub.s32 %v225, %v227
    %v229 = vrot.slane %v201, %v228
    %v230 = vcombine.low %v208, %v222
    %v231 = vcombine.high %v208, %v222
    %v232 = vcombine.low %v215, %v229
    %v233 = vcombine.high %v215, %v229
    %v234 = vcombine.low %v46, %v52
    %v235 = vcombine.high %v46, %v52
    %v236 = vcombine.low %v58, %v64
    %v237 = vcombine.high %v58, %v64
    %v239 = vunpack.c.l.s4 1983009808
    %v240 = vunpack.c.0.s8 %v239
    %v241 = vlaneseq
    %v242 = vshrl.u32 %v241, 7
    %v243 = vsub.s32 %v240, %v242
    %v244 = vrot.slane %v234, %v243
    %v246 = vunpack.c.l.s4 1983009808
    %v247 = vunpack.c.0.s8 %v246
    %v248 = vlaneseq
    %v249 = vshrl.u32 %v248, 7
    %v250 = vsub.s32 %v247, %v249
    %v251 = vrot.slane %v235, %v250
    %v253 = vunpack.c.l.s4 1983009808
    %v254 = vunpack.c.0.s8 %v253
    %v255 = vlaneseq
    %v256 = vshrl.u32 %v255, 7
    %v257 = vsub.s32 %v254, %v256
    %v258 = vrot.slane %v236, %v257
    %v260 = vunpack.c.l.s4 1983009808
    %v261 = vunpack.c.0.s8 %v260
    %v262 = vlaneseq
    %v263 = vshrl.u32 %v262, 7
    %v264 = vsub.s32 %v261, %v263
    %v265 = vrot.slane %v237, %v264
    %v266 = vcombine.low %v244, %v258
    %v267 = vcombine.high %v244, %v258
    %v268 = vcombine.low %v251, %v265
    %v269 = vcombine.high %v251, %v265
    %v270 = vcombine.low %v47, %v53
    %v271 = vcombine.high %v47, %v53
    %v272 = vcombine.low %v59, %v65
    %v273 = vcombine.high %v59, %v65
    %v275 = vunpack.c.l.s4 1983009808
    %v276 = vunpack.c.0.s8 %v275
    %v277 = vlaneseq
    %v278 = vshrl.u32 %v277, 7
    %v279 = vsub.s32 %v276, %v278
    %v280 = vrot.slane %v270, %v279
    %v282 = vunpack.c.l.s4 1983009808
    %v283 = vunpack.c.0.s8 %v282
    %v284 = vlaneseq
    %v285 = vshrl.u32 %v284, 7
    %v286 = vsub.s32 %v283, %v285
    %v287 = vrot.slane %v271, %v286
    %v289 = vunpack.c.l.s4 1983009808
    %v290 = vunpack.c.0.s8 %v289
    %v291 = vlaneseq
    %v292 = vshrl.u32 %v291, 7
    %v293 = vsub.s32 %v290, %v292
    %v294 = vrot.slane %v272, %v293
    %v296 = vunpack.c.l.s4 1983009808
    %v297 = vunpack.c.0.s8 %v296
    %v298 = vlaneseq
    %v299 = vshrl.u32 %v298, 7
    %v300 = vsub.s32 %v297, %v299
    %v301 = vrot.slane %v273, %v300
    %v302 = vcombine.low %v280, %v294
    %v303 = vcombine.high %v280, %v294
    %v304 = vcombine.low %v287, %v301
    %v305 = vcombine.high %v287, %v301
    %v330 = vpack.c.bf16 %v122, %v122
    %v331 = vpack.c.bf16 %v123, %v123
    %v332 = vpack.c.bf16 %v124, %v124
    %v333 = vpack.c.bf16 %v125, %v125
    %v334 = vpack.c.bf16 %v158, %v158
    %v335 = vpack.c.bf16 %v159, %v159
    %v336 = vpack.c.bf16 %v160, %v160
    %v337 = vpack.c.bf16 %v161, %v161
    %v338 = vpack.c.bf16 %v194, %v194
    %v339 = vpack.c.bf16 %v195, %v195
    %v340 = vpack.c.bf16 %v196, %v196
    %v341 = vpack.c.bf16 %v197, %v197
    %v342 = vpack.c.bf16 %v230, %v230
    %v343 = vpack.c.bf16 %v231, %v231
    %v344 = vpack.c.bf16 %v232, %v232
    %v345 = vpack.c.bf16 %v233, %v233
    %v346 = vpack.c.bf16 %v266, %v266
    %v347 = vpack.c.bf16 %v267, %v267
    %v348 = vpack.c.bf16 %v268, %v268
    %v349 = vpack.c.bf16 %v269, %v269
    %v350 = vpack.c.bf16 %v302, %v302
    %v351 = vpack.c.bf16 %v303, %v303
    %v352 = vpack.c.bf16 %v304, %v304
    %v353 = vpack.c.bf16 %v305, %v305
    %v354 = vld [vmem:[#allocation2] sm:$0xf]
    %v355 = vld [vmem:[#allocation2 + $0x4] sm:$0xf]
    %v356 = vld [vmem:[#allocation2 + $0x8] sm:$0xf]
    %v357 = vld [vmem:[#allocation2 + $0xc] sm:$0xf]
    %v358 = vld [vmem:[#allocation2 + $0x10] sm:$0xf]
    %v359 = vld [vmem:[#allocation2 + $0x14] sm:$0xf]
    %v360 = vld [vmem:[#allocation2 + $0x18] sm:$0xf]
    %v361 = vld [vmem:[#allocation2 + $0x1c] sm:$0xf]
    %v362 = vld [vmem:[#allocation2 + $0x20] sm:$0xf]
    %v363 = vld [vmem:[#allocation2 + $0x24] sm:$0xf]
    %v364 = vld [vmem:[#allocation2 + $0x28] sm:$0xf]
    %v365 = vld [vmem:[#allocation2 + $0x2c] sm:$0xf]
    %v366 = vld [vmem:[#allocation2 + $0x30] sm:$0xf]
    %v367 = vld [vmem:[#allocation2 + $0x34] sm:$0xf]
    %v368 = vld [vmem:[#allocation2 + $0x38] sm:$0xf]
    %v369 = vld [vmem:[#allocation2 + $0x3c] sm:$0xf]
    %v370 = vld [vmem:[#allocation2 + $0x40] sm:$0xf]
    %v371 = vld [vmem:[#allocation2 + $0x44] sm:$0xf]
    %v372 = vld [vmem:[#allocation2 + $0x48] sm:$0xf]
    %v373 = vld [vmem:[#allocation2 + $0x4c] sm:$0xf]
    %v374 = vld [vmem:[#allocation2 + $0x50] sm:$0xf]
    %v375 = vld [vmem:[#allocation2 + $0x54] sm:$0xf]
    %v376 = vld [vmem:[#allocation2 + $0x58] sm:$0xf]
    %v377 = vld [vmem:[#allocation2 + $0x5c] sm:$0xf]
    %v378 = vld [vmem:[#allocation2 + $0x60] sm:$0xf]
    %v379 = vld [vmem:[#allocation2 + $0x64] sm:$0xf]
    %v380 = vld [vmem:[#allocation2 + $0x68] sm:$0xf]
    %v381 = vld [vmem:[#allocation2 + $0x6c] sm:$0xf]
    %v382 = vld [vmem:[#allocation2 + $0x70] sm:$0xf]
    %v383 = vld [vmem:[#allocation2 + $0x74] sm:$0xf]
    %v384 = vld [vmem:[#allocation2 + $0x78] sm:$0xf]
    %v385 = vld [vmem:[#allocation2 + $0x7c] sm:$0xf]
    %v386 = vld [vmem:[#allocation2 + $0x80] sm:$0xf]
    %v387 = vld [vmem:[#allocation2 + $0x84] sm:$0xf]
    %v388 = vld [vmem:[#allocation2 + $0x88] sm:$0xf]
    %v389 = vld [vmem:[#allocation2 + $0x8c] sm:$0xf]
    %v390 = vld [vmem:[#allocation2 + $0x90] sm:$0xf]
    %v391 = vld [vmem:[#allocation2 + $0x94] sm:$0xf]
    %v392 = vld [vmem:[#allocation2 + $0x98] sm:$0xf]
    %v393 = vld [vmem:[#allocation2 + $0x9c] sm:$0xf]
    %v394 = vld [vmem:[#allocation2 + $0xa0] sm:$0xf]
    %v395 = vld [vmem:[#allocation2 + $0xa4] sm:$0xf]
    %v396 = vld [vmem:[#allocation2 + $0xa8] sm:$0xf]
    %v397 = vld [vmem:[#allocation2 + $0xac] sm:$0xf]
    %v398 = vld [vmem:[#allocation2 + $0xb0] sm:$0xf]
    %v399 = vld [vmem:[#allocation2 + $0xb4] sm:$0xf]
    %v400 = vld [vmem:[#allocation2 + $0xb8] sm:$0xf]
    %v401 = vld [vmem:[#allocation2 + $0xbc] sm:$0xf]
    %v402 = vld [vmem:[#allocation2 + $0xc0] sm:$0xf]
    %v403 = vld [vmem:[#allocation2 + $0xc4] sm:$0xf]
    %v404 = vld [vmem:[#allocation2 + $0xc8] sm:$0xf]
    %v405 = vld [vmem:[#allocation2 + $0xcc] sm:$0xf]
    %v406 = vld [vmem:[#allocation2 + $0xd0] sm:$0xf]
    %v407 = vld [vmem:[#allocation2 + $0xd4] sm:$0xf]
    %v408 = vld [vmem:[#allocation2 + $0xd8] sm:$0xf]
    %v409 = vld [vmem:[#allocation2 + $0xdc] sm:$0xf]
    %v410 = vld [vmem:[#allocation2 + $0xe0] sm:$0xf]
    %v411 = vld [vmem:[#allocation2 + $0xe4] sm:$0xf]
    %v412 = vld [vmem:[#allocation2 + $0xe8] sm:$0xf]
    %v413 = vld [vmem:[#allocation2 + $0xec] sm:$0xf]
    %v414 = vld [vmem:[#allocation2 + $0xf0] sm:$0xf]
    %v415 = vld [vmem:[#allocation2 + $0xf4] sm:$0xf]
    %v416 = vld [vmem:[#allocation2 + $0xf8] sm:$0xf]
    %v417 = vld [vmem:[#allocation2 + $0xfc] sm:$0xf]
    %v418 = vld [vmem:[#allocation2 + $0x100] sm:$0xf]
    %v419 = vld [vmem:[#allocation2 + $0x104] sm:$0xf]
    %v420 = vld [vmem:[#allocation2 + $0x108] sm:$0xf]
    %v421 = vld [vmem:[#allocation2 + $0x10c] sm:$0xf]
    %v422 = vld [vmem:[#allocation2 + $0x110] sm:$0xf]
    %v423 = vld [vmem:[#allocation2 + $0x114] sm:$0xf]
    %v424 = vld [vmem:[#allocation2 + $0x118] sm:$0xf]
    %v425 = vld [vmem:[#allocation2 + $0x11c] sm:$0xf]
    %v426 = vld [vmem:[#allocation2 + $0x120] sm:$0xf]
    %v427 = vld [vmem:[#allocation2 + $0x124] sm:$0xf]
    %v428 = vld [vmem:[#allocation2 + $0x128] sm:$0xf]
    %v429 = vld [vmem:[#allocation2 + $0x12c] sm:$0xf]
    %v430 = vld [vmem:[#allocation2 + $0x130] sm:$0xf]
    %v431 = vld [vmem:[#allocation2 + $0x134] sm:$0xf]
    %v432 = vld [vmem:[#allocation2 + $0x138] sm:$0xf]
    %v433 = vld [vmem:[#allocation2 + $0x13c] sm:$0xf]
    %v434 = vld [vmem:[#allocation2 + $0x140] sm:$0xf]
    %v435 = vld [vmem:[#allocation2 + $0x144] sm:$0xf]
    %v436 = vld [vmem:[#allocation2 + $0x148] sm:$0xf]
    %v437 = vld [vmem:[#allocation2 + $0x14c] sm:$0xf]
    %v438 = vld [vmem:[#allocation2 + $0x150] sm:$0xf]
    %v439 = vld [vmem:[#allocation2 + $0x154] sm:$0xf]
    %v440 = vld [vmem:[#allocation2 + $0x158] sm:$0xf]
    %v441 = vld [vmem:[#allocation2 + $0x15c] sm:$0xf]
    %v442 = vld [vmem:[#allocation2 + $0x160] sm:$0xf]
    %v443 = vld [vmem:[#allocation2 + $0x164] sm:$0xf]
    %v444 = vld [vmem:[#allocation2 + $0x168] sm:$0xf]
    %v445 = vld [vmem:[#allocation2 + $0x16c] sm:$0xf]
    %v446 = vld [vmem:[#allocation2 + $0x170] sm:$0xf]
    %v447 = vld [vmem:[#allocation2 + $0x174] sm:$0xf]
    %v448 = vld [vmem:[#allocation2 + $0x178] sm:$0xf]
    %v449 = vld [vmem:[#allocation2 + $0x17c] sm:$0xf]
    %v450 = vld [vmem:[#allocation2 + $0x180] sm:$0xf]
    %v451 = vld [vmem:[#allocation2 + $0x184] sm:$0xf]
    %v452 = vld [vmem:[#allocation2 + $0x188] sm:$0xf]
    %v453 = vld [vmem:[#allocation2 + $0x18c] sm:$0xf]
    %v454 = vld [vmem:[#allocation2 + $0x190] sm:$0xf]
    %v455 = vld [vmem:[#allocation2 + $0x194] sm:$0xf]
    %v456 = vld [vmem:[#allocation2 + $0x198] sm:$0xf]
    %v457 = vld [vmem:[#allocation2 + $0x19c] sm:$0xf]
    %v458 = vld [vmem:[#allocation2 + $0x1a0] sm:$0xf]
    %v459 = vld [vmem:[#allocation2 + $0x1a4] sm:$0xf]
    %v460 = vld [vmem:[#allocation2 + $0x1a8] sm:$0xf]
    %v461 = vld [vmem:[#allocation2 + $0x1ac] sm:$0xf]
    %v462 = vld [vmem:[#allocation2 + $0x1b0] sm:$0xf]
    %v463 = vld [vmem:[#allocation2 + $0x1b4] sm:$0xf]
    %v464 = vld [vmem:[#allocation2 + $0x1b8] sm:$0xf]
    %v465 = vld [vmem:[#allocation2 + $0x1bc] sm:$0xf]
    %v466 = vld [vmem:[#allocation2 + $0x1c0] sm:$0xf]
    %v467 = vld [vmem:[#allocation2 + $0x1c4] sm:$0xf]
    %v468 = vld [vmem:[#allocation2 + $0x1c8] sm:$0xf]
    %v469 = vld [vmem:[#allocation2 + $0x1cc] sm:$0xf]
    %v470 = vld [vmem:[#allocation2 + $0x1d0] sm:$0xf]
    %v471 = vld [vmem:[#allocation2 + $0x1d4] sm:$0xf]
    %v472 = vld [vmem:[#allocation2 + $0x1d8] sm:$0xf]
    %v473 = vld [vmem:[#allocation2 + $0x1dc] sm:$0xf]
    %v474 = vld [vmem:[#allocation2 + $0x1e0] sm:$0xf]
    %v475 = vld [vmem:[#allocation2 + $0x1e4] sm:$0xf]
    %v476 = vld [vmem:[#allocation2 + $0x1e8] sm:$0xf]
    %v477 = vld [vmem:[#allocation2 + $0x1ec] sm:$0xf]
    %v478 = vld [vmem:[#allocation2 + $0x1f0] sm:$0xf]
    %v479 = vld [vmem:[#allocation2 + $0x1f4] sm:$0xf]
    %v480 = vld [vmem:[#allocation2 + $0x1f8] sm:$0xf]
    %v481 = vld [vmem:[#allocation2 + $0x1fc] sm:$0xf]
    %v482 = vld [vmem:[#allocation2 + $0x200] sm:$0xf]
    %v483 = vld [vmem:[#allocation2 + $0x204] sm:$0xf]
    %v484 = vld [vmem:[#allocation2 + $0x208] sm:$0xf]
    %v485 = vld [vmem:[#allocation2 + $0x20c] sm:$0xf]
    %v486 = vld [vmem:[#allocation2 + $0x210] sm:$0xf]
    %v487 = vld [vmem:[#allocation2 + $0x214] sm:$0xf]
    %v488 = vld [vmem:[#allocation2 + $0x218] sm:$0xf]
    %v489 = vld [vmem:[#allocation2 + $0x21c] sm:$0xf]
    %v490 = vld [vmem:[#allocation2 + $0x220] sm:$0xf]
    %v491 = vld [vmem:[#allocation2 + $0x224] sm:$0xf]
    %v492 = vld [vmem:[#allocation2 + $0x228] sm:$0xf]
    %v493 = vld [vmem:[#allocation2 + $0x22c] sm:$0xf]
    %v494 = vld [vmem:[#allocation2 + $0x230] sm:$0xf]
    %v495 = vld [vmem:[#allocation2 + $0x234] sm:$0xf]
    %v496 = vld [vmem:[#allocation2 + $0x238] sm:$0xf]
    %v497 = vld [vmem:[#allocation2 + $0x23c] sm:$0xf]
    %v498 = vld [vmem:[#allocation2 + $0x240] sm:$0xf]
    %v499 = vld [vmem:[#allocation2 + $0x244] sm:$0xf]
    %v500 = vld [vmem:[#allocation2 + $0x248] sm:$0xf]
    %v501 = vld [vmem:[#allocation2 + $0x24c] sm:$0xf]
    %v502 = vld [vmem:[#allocation2 + $0x250] sm:$0xf]
    %v503 = vld [vmem:[#allocation2 + $0x254] sm:$0xf]
    %v504 = vld [vmem:[#allocation2 + $0x258] sm:$0xf]
    %v505 = vld [vmem:[#allocation2 + $0x25c] sm:$0xf]
    %v506 = vld [vmem:[#allocation2 + $0x260] sm:$0xf]
    %v507 = vld [vmem:[#allocation2 + $0x264] sm:$0xf]
    %v508 = vld [vmem:[#allocation2 + $0x268] sm:$0xf]
    %v509 = vld [vmem:[#allocation2 + $0x26c] sm:$0xf]
    %v510 = vld [vmem:[#allocation2 + $0x270] sm:$0xf]
    %v511 = vld [vmem:[#allocation2 + $0x274] sm:$0xf]
    %v512 = vld [vmem:[#allocation2 + $0x278] sm:$0xf]
    %v513 = vld [vmem:[#allocation2 + $0x27c] sm:$0xf]
    %v514 = vld [vmem:[#allocation2 + $0x280] sm:$0xf]
    %v515 = vld [vmem:[#allocation2 + $0x284] sm:$0xf]
    %v516 = vld [vmem:[#allocation2 + $0x288] sm:$0xf]
    %v517 = vld [vmem:[#allocation2 + $0x28c] sm:$0xf]
    %v518 = vld [vmem:[#allocation2 + $0x290] sm:$0xf]
    %v519 = vld [vmem:[#allocation2 + $0x294] sm:$0xf]
    %v520 = vld [vmem:[#allocation2 + $0x298] sm:$0xf]
    %v521 = vld [vmem:[#allocation2 + $0x29c] sm:$0xf]
    %v522 = vld [vmem:[#allocation2 + $0x2a0] sm:$0xf]
    %v523 = vld [vmem:[#allocation2 + $0x2a4] sm:$0xf]
    %v524 = vld [vmem:[#allocation2 + $0x2a8] sm:$0xf]
    %v525 = vld [vmem:[#allocation2 + $0x2ac] sm:$0xf]
    %v526 = vld [vmem:[#allocation2 + $0x2b0] sm:$0xf]
    %v527 = vld [vmem:[#allocation2 + $0x2b4] sm:$0xf]
    %v528 = vld [vmem:[#allocation2 + $0x2b8] sm:$0xf]
    %v529 = vld [vmem:[#allocation2 + $0x2bc] sm:$0xf]
    %v530 = vld [vmem:[#allocation2 + $0x2c0] sm:$0xf]
    %v531 = vld [vmem:[#allocation2 + $0x2c4] sm:$0xf]
    %v532 = vld [vmem:[#allocation2 + $0x2c8] sm:$0xf]
    %v533 = vld [vmem:[#allocation2 + $0x2cc] sm:$0xf]
    %v534 = vld [vmem:[#allocation2 + $0x2d0] sm:$0xf]
    %v535 = vld [vmem:[#allocation2 + $0x2d4] sm:$0xf]
    %v536 = vld [vmem:[#allocation2 + $0x2d8] sm:$0xf]
    %v537 = vld [vmem:[#allocation2 + $0x2dc] sm:$0xf]
    %v538 = vld [vmem:[#allocation2 + $0x2e0] sm:$0xf]
    %v539 = vld [vmem:[#allocation2 + $0x2e4] sm:$0xf]
    %v540 = vld [vmem:[#allocation2 + $0x2e8] sm:$0xf]
    %v541 = vld [vmem:[#allocation2 + $0x2ec] sm:$0xf]
    %v542 = vld [vmem:[#allocation2 + $0x2f0] sm:$0xf]
    %v543 = vld [vmem:[#allocation2 + $0x2f4] sm:$0xf]
    %v544 = vld [vmem:[#allocation2 + $0x2f8] sm:$0xf]
    %v545 = vld [vmem:[#allocation2 + $0x2fc] sm:$0xf]
    %v546 = vld [vmem:[#allocation2 + $0x300] sm:$0xf]
    %v547 = vld [vmem:[#allocation2 + $0x304] sm:$0xf]
    %v548 = vld [vmem:[#allocation2 + $0x308] sm:$0xf]
    %v549 = vld [vmem:[#allocation2 + $0x30c] sm:$0xf]
    %v550 = vld [vmem:[#allocation2 + $0x310] sm:$0xf]
    %v551 = vld [vmem:[#allocation2 + $0x314] sm:$0xf]
    %v552 = vld [vmem:[#allocation2 + $0x318] sm:$0xf]
    %v553 = vld [vmem:[#allocation2 + $0x31c] sm:$0xf]
    %v554 = vld [vmem:[#allocation2 + $0x320] sm:$0xf]
    %v555 = vld [vmem:[#allocation2 + $0x324] sm:$0xf]
    %v556 = vld [vmem:[#allocation2 + $0x328] sm:$0xf]
    %v557 = vld [vmem:[#allocation2 + $0x32c] sm:$0xf]
    %v558 = vld [vmem:[#allocation2 + $0x330] sm:$0xf]
    %v559 = vld [vmem:[#allocation2 + $0x334] sm:$0xf]
    %v560 = vld [vmem:[#allocation2 + $0x338] sm:$0xf]
    %v561 = vld [vmem:[#allocation2 + $0x33c] sm:$0xf]
    %v562 = vld [vmem:[#allocation2 + $0x340] sm:$0xf]
    %v563 = vld [vmem:[#allocation2 + $0x344] sm:$0xf]
    %v564 = vld [vmem:[#allocation2 + $0x348] sm:$0xf]
    %v565 = vld [vmem:[#allocation2 + $0x34c] sm:$0xf]
    %v566 = vld [vmem:[#allocation2 + $0x350] sm:$0xf]
    %v567 = vld [vmem:[#allocation2 + $0x354] sm:$0xf]
    %v568 = vld [vmem:[#allocation2 + $0x358] sm:$0xf]
    %v569 = vld [vmem:[#allocation2 + $0x35c] sm:$0xf]
    %v570 = vld [vmem:[#allocation2 + $0x360] sm:$0xf]
    %v571 = vld [vmem:[#allocation2 + $0x364] sm:$0xf]
    %v572 = vld [vmem:[#allocation2 + $0x368] sm:$0xf]
    %v573 = vld [vmem:[#allocation2 + $0x36c] sm:$0xf]
    %v574 = vld [vmem:[#allocation2 + $0x370] sm:$0xf]
    %v575 = vld [vmem:[#allocation2 + $0x374] sm:$0xf]
    %v576 = vld [vmem:[#allocation2 + $0x378] sm:$0xf]
    %v577 = vld [vmem:[#allocation2 + $0x37c] sm:$0xf]
    %v578 = vld [vmem:[#allocation2 + $0x380] sm:$0xf]
    %v579 = vld [vmem:[#allocation2 + $0x384] sm:$0xf]
    %v580 = vld [vmem:[#allocation2 + $0x388] sm:$0xf]
    %v581 = vld [vmem:[#allocation2 + $0x38c] sm:$0xf]
    %v582 = vld [vmem:[#allocation2 + $0x390] sm:$0xf]
    %v583 = vld [vmem:[#allocation2 + $0x394] sm:$0xf]
    %v584 = vld [vmem:[#allocation2 + $0x398] sm:$0xf]
    %v585 = vld [vmem:[#allocation2 + $0x39c] sm:$0xf]
    %v586 = vld [vmem:[#allocation2 + $0x3a0] sm:$0xf]
    %v587 = vld [vmem:[#allocation2 + $0x3a4] sm:$0xf]
    %v588 = vld [vmem:[#allocation2 + $0x3a8] sm:$0xf]
    %v589 = vld [vmem:[#allocation2 + $0x3ac] sm:$0xf]
    %v590 = vld [vmem:[#allocation2 + $0x3b0] sm:$0xf]
    %v591 = vld [vmem:[#allocation2 + $0x3b4] sm:$0xf]
    %v592 = vld [vmem:[#allocation2 + $0x3b8] sm:$0xf]
    %v593 = vld [vmem:[#allocation2 + $0x3bc] sm:$0xf]
    %v594 = vld [vmem:[#allocation2 + $0x3c0] sm:$0xf]
    %v595 = vld [vmem:[#allocation2 + $0x3c4] sm:$0xf]
    %v596 = vld [vmem:[#allocation2 + $0x3c8] sm:$0xf]
    %v597 = vld [vmem:[#allocation2 + $0x3cc] sm:$0xf]
    %v598 = vld [vmem:[#allocation2 + $0x3d0] sm:$0xf]
    %v599 = vld [vmem:[#allocation2 + $0x3d4] sm:$0xf]
    %v600 = vld [vmem:[#allocation2 + $0x3d8] sm:$0xf]
    %v601 = vld [vmem:[#allocation2 + $0x3dc] sm:$0xf]
    %v602 = vld [vmem:[#allocation2 + $0x3e0] sm:$0xf]
    %v603 = vld [vmem:[#allocation2 + $0x3e4] sm:$0xf]
    %v604 = vld [vmem:[#allocation2 + $0x3e8] sm:$0xf]
    %v605 = vld [vmem:[#allocation2 + $0x3ec] sm:$0xf]
    %v606 = vld [vmem:[#allocation2 + $0x3f0] sm:$0xf]
    %v607 = vld [vmem:[#allocation2 + $0x3f4] sm:$0xf]
    %v608 = vld [vmem:[#allocation2 + $0x3f8] sm:$0xf]
    %v609 = vld [vmem:[#allocation2 + $0x3fc] sm:$0xf]
    %v610 = vld [vmem:[#allocation2 + $0x400] sm:$0xf]
    %v611 = vld [vmem:[#allocation2 + $0x404] sm:$0xf]
    %v612 = vld [vmem:[#allocation2 + $0x408] sm:$0xf]
    %v613 = vld [vmem:[#allocation2 + $0x40c] sm:$0xf]
    %v614 = vld [vmem:[#allocation2 + $0x410] sm:$0xf]
    %v615 = vld [vmem:[#allocation2 + $0x414] sm:$0xf]
    %v616 = vld [vmem:[#allocation2 + $0x418] sm:$0xf]
    %v617 = vld [vmem:[#allocation2 + $0x41c] sm:$0xf]
    %v618 = vld [vmem:[#allocation2 + $0x420] sm:$0xf]
    %v619 = vld [vmem:[#allocation2 + $0x424] sm:$0xf]
    %v620 = vld [vmem:[#allocation2 + $0x428] sm:$0xf]
    %v621 = vld [vmem:[#allocation2 + $0x42c] sm:$0xf]
    %v622 = vld [vmem:[#allocation2 + $0x430] sm:$0xf]
    %v623 = vld [vmem:[#allocation2 + $0x434] sm:$0xf]
    %v624 = vld [vmem:[#allocation2 + $0x438] sm:$0xf]
    %v625 = vld [vmem:[#allocation2 + $0x43c] sm:$0xf]
    %v626 = vld [vmem:[#allocation2 + $0x440] sm:$0xf]
    %v627 = vld [vmem:[#allocation2 + $0x444] sm:$0xf]
    %v628 = vld [vmem:[#allocation2 + $0x448] sm:$0xf]
    %v629 = vld [vmem:[#allocation2 + $0x44c] sm:$0xf]
    %v630 = vld [vmem:[#allocation2 + $0x450] sm:$0xf]
    %v631 = vld [vmem:[#allocation2 + $0x454] sm:$0xf]
    %v632 = vld [vmem:[#allocation2 + $0x458] sm:$0xf]
    %v633 = vld [vmem:[#allocation2 + $0x45c] sm:$0xf]
    %v634 = vld [vmem:[#allocation2 + $0x460] sm:$0xf]
    %v635 = vld [vmem:[#allocation2 + $0x464] sm:$0xf]
    %v636 = vld [vmem:[#allocation2 + $0x468] sm:$0xf]
    %v637 = vld [vmem:[#allocation2 + $0x46c] sm:$0xf]
    %v638 = vld [vmem:[#allocation2 + $0x470] sm:$0xf]
    %v639 = vld [vmem:[#allocation2 + $0x474] sm:$0xf]
    %v640 = vld [vmem:[#allocation2 + $0x478] sm:$0xf]
    %v641 = vld [vmem:[#allocation2 + $0x47c] sm:$0xf]
    %v642 = vld [vmem:[#allocation2 + $0x480] sm:$0xf]
    %v643 = vld [vmem:[#allocation2 + $0x484] sm:$0xf]
    %v644 = vld [vmem:[#allocation2 + $0x488] sm:$0xf]
    %v645 = vld [vmem:[#allocation2 + $0x48c] sm:$0xf]
    %v646 = vld [vmem:[#allocation2 + $0x490] sm:$0xf]
    %v647 = vld [vmem:[#allocation2 + $0x494] sm:$0xf]
    %v648 = vld [vmem:[#allocation2 + $0x498] sm:$0xf]
    %v649 = vld [vmem:[#allocation2 + $0x49c] sm:$0xf]
    %v650 = vld [vmem:[#allocation2 + $0x4a0] sm:$0xf]
    %v651 = vld [vmem:[#allocation2 + $0x4a4] sm:$0xf]
    %v652 = vld [vmem:[#allocation2 + $0x4a8] sm:$0xf]
    %v653 = vld [vmem:[#allocation2 + $0x4ac] sm:$0xf]
    %v654 = vld [vmem:[#allocation2 + $0x4b0] sm:$0xf]
    %v655 = vld [vmem:[#allocation2 + $0x4b4] sm:$0xf]
    %v656 = vld [vmem:[#allocation2 + $0x4b8] sm:$0xf]
    %v657 = vld [vmem:[#allocation2 + $0x4bc] sm:$0xf]
    %v658 = vld [vmem:[#allocation2 + $0x4c0] sm:$0xf]
    %v659 = vld [vmem:[#allocation2 + $0x4c4] sm:$0xf]
    %v660 = vld [vmem:[#allocation2 + $0x4c8] sm:$0xf]
    %v661 = vld [vmem:[#allocation2 + $0x4cc] sm:$0xf]
    %v662 = vld [vmem:[#allocation2 + $0x4d0] sm:$0xf]
    %v663 = vld [vmem:[#allocation2 + $0x4d4] sm:$0xf]
    %v664 = vld [vmem:[#allocation2 + $0x4d8] sm:$0xf]
    %v665 = vld [vmem:[#allocation2 + $0x4dc] sm:$0xf]
    %v666 = vld [vmem:[#allocation2 + $0x4e0] sm:$0xf]
    %v667 = vld [vmem:[#allocation2 + $0x4e4] sm:$0xf]
    %v668 = vld [vmem:[#allocation2 + $0x4e8] sm:$0xf]
    %v669 = vld [vmem:[#allocation2 + $0x4ec] sm:$0xf]
    %v670 = vld [vmem:[#allocation2 + $0x4f0] sm:$0xf]
    %v671 = vld [vmem:[#allocation2 + $0x4f4] sm:$0xf]
    %v672 = vld [vmem:[#allocation2 + $0x4f8] sm:$0xf]
    %v673 = vld [vmem:[#allocation2 + $0x4fc] sm:$0xf]
    %v674 = vld [vmem:[#allocation2 + $0x500] sm:$0xf]
    %v675 = vld [vmem:[#allocation2 + $0x504] sm:$0xf]
    %v676 = vld [vmem:[#allocation2 + $0x508] sm:$0xf]
    %v677 = vld [vmem:[#allocation2 + $0x50c] sm:$0xf]
    %v678 = vld [vmem:[#allocation2 + $0x510] sm:$0xf]
    %v679 = vld [vmem:[#allocation2 + $0x514] sm:$0xf]
    %v680 = vld [vmem:[#allocation2 + $0x518] sm:$0xf]
    %v681 = vld [vmem:[#allocation2 + $0x51c] sm:$0xf]
    %v682 = vld [vmem:[#allocation2 + $0x520] sm:$0xf]
    %v683 = vld [vmem:[#allocation2 + $0x524] sm:$0xf]
    %v684 = vld [vmem:[#allocation2 + $0x528] sm:$0xf]
    %v685 = vld [vmem:[#allocation2 + $0x52c] sm:$0xf]
    %v686 = vld [vmem:[#allocation2 + $0x530] sm:$0xf]
    %v687 = vld [vmem:[#allocation2 + $0x534] sm:$0xf]
    %v688 = vld [vmem:[#allocation2 + $0x538] sm:$0xf]
    %v689 = vld [vmem:[#allocation2 + $0x53c] sm:$0xf]
    %v690 = vld [vmem:[#allocation2 + $0x540] sm:$0xf]
    %v691 = vld [vmem:[#allocation2 + $0x544] sm:$0xf]
    %v692 = vld [vmem:[#allocation2 + $0x548] sm:$0xf]
    %v693 = vld [vmem:[#allocation2 + $0x54c] sm:$0xf]
    %v694 = vld [vmem:[#allocation2 + $0x550] sm:$0xf]
    %v695 = vld [vmem:[#allocation2 + $0x554] sm:$0xf]
    %v696 = vld [vmem:[#allocation2 + $0x558] sm:$0xf]
    %v697 = vld [vmem:[#allocation2 + $0x55c] sm:$0xf]
    %v698 = vld [vmem:[#allocation2 + $0x560] sm:$0xf]
    %v699 = vld [vmem:[#allocation2 + $0x564] sm:$0xf]
    %v700 = vld [vmem:[#allocation2 + $0x568] sm:$0xf]
    %v701 = vld [vmem:[#allocation2 + $0x56c] sm:$0xf]
    %v702 = vld [vmem:[#allocation2 + $0x570] sm:$0xf]
    %v703 = vld [vmem:[#allocation2 + $0x574] sm:$0xf]
    %v704 = vld [vmem:[#allocation2 + $0x578] sm:$0xf]
    %v705 = vld [vmem:[#allocation2 + $0x57c] sm:$0xf]
    %v706 = vld [vmem:[#allocation2 + $0x580] sm:$0xf]
    %v707 = vld [vmem:[#allocation2 + $0x584] sm:$0xf]
    %v708 = vld [vmem:[#allocation2 + $0x588] sm:$0xf]
    %v709 = vld [vmem:[#allocation2 + $0x58c] sm:$0xf]
    %v710 = vld [vmem:[#allocation2 + $0x590] sm:$0xf]
    %v711 = vld [vmem:[#allocation2 + $0x594] sm:$0xf]
    %v712 = vld [vmem:[#allocation2 + $0x598] sm:$0xf]
    %v713 = vld [vmem:[#allocation2 + $0x59c] sm:$0xf]
    %v714 = vld [vmem:[#allocation2 + $0x5a0] sm:$0xf]
    %v715 = vld [vmem:[#allocation2 + $0x5a4] sm:$0xf]
    %v716 = vld [vmem:[#allocation2 + $0x5a8] sm:$0xf]
    %v717 = vld [vmem:[#allocation2 + $0x5ac] sm:$0xf]
    %v718 = vld [vmem:[#allocation2 + $0x5b0] sm:$0xf]
    %v719 = vld [vmem:[#allocation2 + $0x5b4] sm:$0xf]
    %v720 = vld [vmem:[#allocation2 + $0x5b8] sm:$0xf]
    %v721 = vld [vmem:[#allocation2 + $0x5bc] sm:$0xf]
    %v722 = vld [vmem:[#allocation2 + $0x5c0] sm:$0xf]
    %v723 = vld [vmem:[#allocation2 + $0x5c4] sm:$0xf]
    %v724 = vld [vmem:[#allocation2 + $0x5c8] sm:$0xf]
    %v725 = vld [vmem:[#allocation2 + $0x5cc] sm:$0xf]
    %v726 = vld [vmem:[#allocation2 + $0x5d0] sm:$0xf]
    %v727 = vld [vmem:[#allocation2 + $0x5d4] sm:$0xf]
    %v728 = vld [vmem:[#allocation2 + $0x5d8] sm:$0xf]
    %v729 = vld [vmem:[#allocation2 + $0x5dc] sm:$0xf]
    %v730 = vld [vmem:[#allocation2 + $0x5e0] sm:$0xf]
    %v731 = vld [vmem:[#allocation2 + $0x5e4] sm:$0xf]
    %v732 = vld [vmem:[#allocation2 + $0x5e8] sm:$0xf]
    %v733 = vld [vmem:[#allocation2 + $0x5ec] sm:$0xf]
    %v734 = vld [vmem:[#allocation2 + $0x5f0] sm:$0xf]
    %v735 = vld [vmem:[#allocation2 + $0x5f4] sm:$0xf]
    %v736 = vld [vmem:[#allocation2 + $0x5f8] sm:$0xf]
    %v737 = vld [vmem:[#allocation2 + $0x5fc] sm:$0xf]
    %v738 = vld [vmem:[%s2] sm:$0x1]
    %v740 = vlaneseq
    %v741 = vshrl.u32 %v740, 7
    %v742 = vsub.s32 0, %v741
    %v743 = vrot.slane %v738, %v742
    %v1129 = vunpack.c.l.b16 %v354
    %v1130 = vunpack.c.l.b16 %v355
    %v1131 = vunpack.c.l.b16 %v356
    %v1132 = vunpack.c.l.b16 %v357
    %v1133 = vunpack.c.l.b16 %v358
    %v1134 = vunpack.c.l.b16 %v359
    %v1135 = vunpack.c.l.b16 %v360
    %v1136 = vunpack.c.l.b16 %v361
    %v1137 = vunpack.c.l.b16 %v362
    %v1138 = vunpack.c.l.b16 %v363
    %v1139 = vunpack.c.l.b16 %v364
    %v1140 = vunpack.c.l.b16 %v365
    %v1141 = vunpack.c.l.b16 %v366
    %v1142 = vunpack.c.l.b16 %v367
    %v1143 = vunpack.c.l.b16 %v368
    %v1144 = vunpack.c.l.b16 %v369
    %v1145 = vunpack.c.l.b16 %v370
    %v1146 = vunpack.c.l.b16 %v371
    %v1147 = vunpack.c.l.b16 %v372
    %v1148 = vunpack.c.l.b16 %v373
    %v1149 = vunpack.c.l.b16 %v374
    %v1150 = vunpack.c.l.b16 %v375
    %v1151 = vunpack.c.l.b16 %v376
    %v1152 = vunpack.c.l.b16 %v377
    %v1153 = vunpack.c.l.b16 %v378
    %v1154 = vunpack.c.l.b16 %v379
    %v1155 = vunpack.c.l.b16 %v380
    %v1156 = vunpack.c.l.b16 %v381
    %v1157 = vunpack.c.l.b16 %v382
    %v1158 = vunpack.c.l.b16 %v383
    %v1159 = vunpack.c.l.b16 %v384
    %v1160 = vunpack.c.l.b16 %v385
    %v1161 = vunpack.c.l.b16 %v386
    %v1162 = vunpack.c.l.b16 %v387
    %v1163 = vunpack.c.l.b16 %v388
    %v1164 = vunpack.c.l.b16 %v389
    %v1165 = vunpack.c.l.b16 %v390
    %v1166 = vunpack.c.l.b16 %v391
    %v1167 = vunpack.c.l.b16 %v392
    %v1168 = vunpack.c.l.b16 %v393
    %v1169 = vunpack.c.l.b16 %v394
    %v1170 = vunpack.c.l.b16 %v395
    %v1171 = vunpack.c.l.b16 %v396
    %v1172 = vunpack.c.l.b16 %v397
    %v1173 = vunpack.c.l.b16 %v398
    %v1174 = vunpack.c.l.b16 %v399
    %v1175 = vunpack.c.l.b16 %v400
    %v1176 = vunpack.c.l.b16 %v401
    %v1177 = vunpack.c.l.b16 %v402
    %v1178 = vunpack.c.l.b16 %v403
    %v1179 = vunpack.c.l.b16 %v404
    %v1180 = vunpack.c.l.b16 %v405
    %v1181 = vunpack.c.l.b16 %v406
    %v1182 = vunpack.c.l.b16 %v407
    %v1183 = vunpack.c.l.b16 %v408
    %v1184 = vunpack.c.l.b16 %v409
    %v1185 = vunpack.c.l.b16 %v410
    %v1186 = vunpack.c.l.b16 %v411
    %v1187 = vunpack.c.l.b16 %v412
    %v1188 = vunpack.c.l.b16 %v413
    %v1189 = vunpack.c.l.b16 %v414
    %v1190 = vunpack.c.l.b16 %v415
    %v1191 = vunpack.c.l.b16 %v416
    %v1192 = vunpack.c.l.b16 %v417
    %v1193 = vunpack.c.l.b16 %v418
    %v1194 = vunpack.c.l.b16 %v419
    %v1195 = vunpack.c.l.b16 %v420
    %v1196 = vunpack.c.l.b16 %v421
    %v1197 = vunpack.c.l.b16 %v422
    %v1198 = vunpack.c.l.b16 %v423
    %v1199 = vunpack.c.l.b16 %v424
    %v1200 = vunpack.c.l.b16 %v425
    %v1201 = vunpack.c.l.b16 %v426
    %v1202 = vunpack.c.l.b16 %v427
    %v1203 = vunpack.c.l.b16 %v428
    %v1204 = vunpack.c.l.b16 %v429
    %v1205 = vunpack.c.l.b16 %v430
    %v1206 = vunpack.c.l.b16 %v431
    %v1207 = vunpack.c.l.b16 %v432
    %v1208 = vunpack.c.l.b16 %v433
    %v1209 = vunpack.c.l.b16 %v434
    %v1210 = vunpack.c.l.b16 %v435
    %v1211 = vunpack.c.l.b16 %v436
    %v1212 = vunpack.c.l.b16 %v437
    %v1213 = vunpack.c.l.b16 %v438
    %v1214 = vunpack.c.l.b16 %v439
    %v1215 = vunpack.c.l.b16 %v440
    %v1216 = vunpack.c.l.b16 %v441
    %v1217 = vunpack.c.l.b16 %v442
    %v1218 = vunpack.c.l.b16 %v443
    %v1219 = vunpack.c.l.b16 %v444
    %v1220 = vunpack.c.l.b16 %v445
    %v1221 = vunpack.c.l.b16 %v446
    %v1222 = vunpack.c.l.b16 %v447
    %v1223 = vunpack.c.l.b16 %v448
    %v1224 = vunpack.c.l.b16 %v449
    %v1225 = vunpack.c.l.b16 %v450
    %v1226 = vunpack.c.l.b16 %v451
    %v1227 = vunpack.c.l.b16 %v452
    %v1228 = vunpack.c.l.b16 %v453
    %v1229 = vunpack.c.l.b16 %v454
    %v1230 = vunpack.c.l.b16 %v455
    %v1231 = vunpack.c.l.b16 %v456
    %v1232 = vunpack.c.l.b16 %v457
    %v1233 = vunpack.c.l.b16 %v458
    %v1234 = vunpack.c.l.b16 %v459
    %v1235 = vunpack.c.l.b16 %v460
    %v1236 = vunpack.c.l.b16 %v461
    %v1237 = vunpack.c.l.b16 %v462
    %v1238 = vunpack.c.l.b16 %v463
    %v1239 = vunpack.c.l.b16 %v464
    %v1240 = vunpack.c.l.b16 %v465
    %v1241 = vunpack.c.l.b16 %v466
    %v1242 = vunpack.c.l.b16 %v467
    %v1243 = vunpack.c.l.b16 %v468
    %v1244 = vunpack.c.l.b16 %v469
    %v1245 = vunpack.c.l.b16 %v470
    %v1246 = vunpack.c.l.b16 %v471
    %v1247 = vunpack.c.l.b16 %v472
    %v1248 = vunpack.c.l.b16 %v473
    %v1249 = vunpack.c.l.b16 %v474
    %v1250 = vunpack.c.l.b16 %v475
    %v1251 = vunpack.c.l.b16 %v476
    %v1252 = vunpack.c.l.b16 %v477
    %v1253 = vunpack.c.l.b16 %v478
    %v1254 = vunpack.c.l.b16 %v479
    %v1255 = vunpack.c.l.b16 %v480
    %v1256 = vunpack.c.l.b16 %v481
    %v1257 = vunpack.c.l.b16 %v482
    %v1258 = vunpack.c.l.b16 %v483
    %v1259 = vunpack.c.l.b16 %v484
    %v1260 = vunpack.c.l.b16 %v485
    %v1261 = vunpack.c.l.b16 %v486
    %v1262 = vunpack.c.l.b16 %v487
    %v1263 = vunpack.c.l.b16 %v488
    %v1264 = vunpack.c.l.b16 %v489
    %v1265 = vunpack.c.l.b16 %v490
    %v1266 = vunpack.c.l.b16 %v491
    %v1267 = vunpack.c.l.b16 %v492
    %v1268 = vunpack.c.l.b16 %v493
    %v1269 = vunpack.c.l.b16 %v494
    %v1270 = vunpack.c.l.b16 %v495
    %v1271 = vunpack.c.l.b16 %v496
    %v1272 = vunpack.c.l.b16 %v497
    %v1273 = vunpack.c.l.b16 %v498
    %v1274 = vunpack.c.l.b16 %v499
    %v1275 = vunpack.c.l.b16 %v500
    %v1276 = vunpack.c.l.b16 %v501
    %v1277 = vunpack.c.l.b16 %v502
    %v1278 = vunpack.c.l.b16 %v503
    %v1279 = vunpack.c.l.b16 %v504
    %v1280 = vunpack.c.l.b16 %v505
    %v1281 = vunpack.c.l.b16 %v506
    %v1282 = vunpack.c.l.b16 %v507
    %v1283 = vunpack.c.l.b16 %v508
    %v1284 = vunpack.c.l.b16 %v509
    %v1285 = vunpack.c.l.b16 %v510
    %v1286 = vunpack.c.l.b16 %v511
    %v1287 = vunpack.c.l.b16 %v512
    %v1288 = vunpack.c.l.b16 %v513
    %v1289 = vunpack.c.l.b16 %v514
    %v1290 = vunpack.c.l.b16 %v515
    %v1291 = vunpack.c.l.b16 %v516
    %v1292 = vunpack.c.l.b16 %v517
    %v1293 = vunpack.c.l.b16 %v518
    %v1294 = vunpack.c.l.b16 %v519
    %v1295 = vunpack.c.l.b16 %v520
    %v1296 = vunpack.c.l.b16 %v521
    %v1297 = vunpack.c.l.b16 %v522
    %v1298 = vunpack.c.l.b16 %v523
    %v1299 = vunpack.c.l.b16 %v524
    %v1300 = vunpack.c.l.b16 %v525
    %v1301 = vunpack.c.l.b16 %v526
    %v1302 = vunpack.c.l.b16 %v527
    %v1303 = vunpack.c.l.b16 %v528
    %v1304 = vunpack.c.l.b16 %v529
    %v1305 = vunpack.c.l.b16 %v530
    %v1306 = vunpack.c.l.b16 %v531
    %v1307 = vunpack.c.l.b16 %v532
    %v1308 = vunpack.c.l.b16 %v533
    %v1309 = vunpack.c.l.b16 %v534
    %v1310 = vunpack.c.l.b16 %v535
    %v1311 = vunpack.c.l.b16 %v536
    %v1312 = vunpack.c.l.b16 %v537
    %v1313 = vunpack.c.l.b16 %v538
    %v1314 = vunpack.c.l.b16 %v539
    %v1315 = vunpack.c.l.b16 %v540
    %v1316 = vunpack.c.l.b16 %v541
    %v1317 = vunpack.c.l.b16 %v542
    %v1318 = vunpack.c.l.b16 %v543
    %v1319 = vunpack.c.l.b16 %v544
    %v1320 = vunpack.c.l.b16 %v545
    %v1321 = vunpack.c.l.b16 %v546
    %v1322 = vunpack.c.l.b16 %v547
    %v1323 = vunpack.c.l.b16 %v548
    %v1324 = vunpack.c.l.b16 %v549
    %v1325 = vunpack.c.l.b16 %v550
    %v1326 = vunpack.c.l.b16 %v551
    %v1327 = vunpack.c.l.b16 %v552
    %v1328 = vunpack.c.l.b16 %v553
    %v1329 = vunpack.c.l.b16 %v554
    %v1330 = vunpack.c.l.b16 %v555
    %v1331 = vunpack.c.l.b16 %v556
    %v1332 = vunpack.c.l.b16 %v557
    %v1333 = vunpack.c.l.b16 %v558
    %v1334 = vunpack.c.l.b16 %v559
    %v1335 = vunpack.c.l.b16 %v560
    %v1336 = vunpack.c.l.b16 %v561
    %v1337 = vunpack.c.l.b16 %v562
    %v1338 = vunpack.c.l.b16 %v563
    %v1339 = vunpack.c.l.b16 %v564
    %v1340 = vunpack.c.l.b16 %v565
    %v1341 = vunpack.c.l.b16 %v566
    %v1342 = vunpack.c.l.b16 %v567
    %v1343 = vunpack.c.l.b16 %v568
    %v1344 = vunpack.c.l.b16 %v569
    %v1345 = vunpack.c.l.b16 %v570
    %v1346 = vunpack.c.l.b16 %v571
    %v1347 = vunpack.c.l.b16 %v572
    %v1348 = vunpack.c.l.b16 %v573
    %v1349 = vunpack.c.l.b16 %v574
    %v1350 = vunpack.c.l.b16 %v575
    %v1351 = vunpack.c.l.b16 %v576
    %v1352 = vunpack.c.l.b16 %v577
    %v1353 = vunpack.c.l.b16 %v578
    %v1354 = vunpack.c.l.b16 %v579
    %v1355 = vunpack.c.l.b16 %v580
    %v1356 = vunpack.c.l.b16 %v581
    %v1357 = vunpack.c.l.b16 %v582
    %v1358 = vunpack.c.l.b16 %v583
    %v1359 = vunpack.c.l.b16 %v584
    %v1360 = vunpack.c.l.b16 %v585
    %v1361 = vunpack.c.l.b16 %v586
    %v1362 = vunpack.c.l.b16 %v587
    %v1363 = vunpack.c.l.b16 %v588
    %v1364 = vunpack.c.l.b16 %v589
    %v1365 = vunpack.c.l.b16 %v590
    %v1366 = vunpack.c.l.b16 %v591
    %v1367 = vunpack.c.l.b16 %v592
    %v1368 = vunpack.c.l.b16 %v593
    %v1369 = vunpack.c.l.b16 %v594
    %v1370 = vunpack.c.l.b16 %v595
    %v1371 = vunpack.c.l.b16 %v596
    %v1372 = vunpack.c.l.b16 %v597
    %v1373 = vunpack.c.l.b16 %v598
    %v1374 = vunpack.c.l.b16 %v599
    %v1375 = vunpack.c.l.b16 %v600
    %v1376 = vunpack.c.l.b16 %v601
    %v1377 = vunpack.c.l.b16 %v602
    %v1378 = vunpack.c.l.b16 %v603
    %v1379 = vunpack.c.l.b16 %v604
    %v1380 = vunpack.c.l.b16 %v605
    %v1381 = vunpack.c.l.b16 %v606
    %v1382 = vunpack.c.l.b16 %v607
    %v1383 = vunpack.c.l.b16 %v608
    %v1384 = vunpack.c.l.b16 %v609
    %v1385 = vunpack.c.l.b16 %v610
    %v1386 = vunpack.c.l.b16 %v611
    %v1387 = vunpack.c.l.b16 %v612
    %v1388 = vunpack.c.l.b16 %v613
    %v1389 = vunpack.c.l.b16 %v614
    %v1390 = vunpack.c.l.b16 %v615
    %v1391 = vunpack.c.l.b16 %v616
    %v1392 = vunpack.c.l.b16 %v617
    %v1393 = vunpack.c.l.b16 %v618
    %v1394 = vunpack.c.l.b16 %v619
    %v1395 = vunpack.c.l.b16 %v620
    %v1396 = vunpack.c.l.b16 %v621
    %v1397 = vunpack.c.l.b16 %v622
    %v1398 = vunpack.c.l.b16 %v623
    %v1399 = vunpack.c.l.b16 %v624
    %v1400 = vunpack.c.l.b16 %v625
    %v1401 = vunpack.c.l.b16 %v626
    %v1402 = vunpack.c.l.b16 %v627
    %v1403 = vunpack.c.l.b16 %v628
    %v1404 = vunpack.c.l.b16 %v629
    %v1405 = vunpack.c.l.b16 %v630
    %v1406 = vunpack.c.l.b16 %v631
    %v1407 = vunpack.c.l.b16 %v632
    %v1408 = vunpack.c.l.b16 %v633
    %v1409 = vunpack.c.l.b16 %v634
    %v1410 = vunpack.c.l.b16 %v635
    %v1411 = vunpack.c.l.b16 %v636
    %v1412 = vunpack.c.l.b16 %v637
    %v1413 = vunpack.c.l.b16 %v638
    %v1414 = vunpack.c.l.b16 %v639
    %v1415 = vunpack.c.l.b16 %v640
    %v1416 = vunpack.c.l.b16 %v641
    %v1417 = vunpack.c.l.b16 %v642
    %v1418 = vunpack.c.l.b16 %v643
    %v1419 = vunpack.c.l.b16 %v644
    %v1420 = vunpack.c.l.b16 %v645
    %v1421 = vunpack.c.l.b16 %v646
    %v1422 = vunpack.c.l.b16 %v647
    %v1423 = vunpack.c.l.b16 %v648
    %v1424 = vunpack.c.l.b16 %v649
    %v1425 = vunpack.c.l.b16 %v650
    %v1426 = vunpack.c.l.b16 %v651
    %v1427 = vunpack.c.l.b16 %v652
    %v1428 = vunpack.c.l.b16 %v653
    %v1429 = vunpack.c.l.b16 %v654
    %v1430 = vunpack.c.l.b16 %v655
    %v1431 = vunpack.c.l.b16 %v656
    %v1432 = vunpack.c.l.b16 %v657
    %v1433 = vunpack.c.l.b16 %v658
    %v1434 = vunpack.c.l.b16 %v659
    %v1435 = vunpack.c.l.b16 %v660
    %v1436 = vunpack.c.l.b16 %v661
    %v1437 = vunpack.c.l.b16 %v662
    %v1438 = vunpack.c.l.b16 %v663
    %v1439 = vunpack.c.l.b16 %v664
    %v1440 = vunpack.c.l.b16 %v665
    %v1441 = vunpack.c.l.b16 %v666
    %v1442 = vunpack.c.l.b16 %v667
    %v1443 = vunpack.c.l.b16 %v668
    %v1444 = vunpack.c.l.b16 %v669
    %v1445 = vunpack.c.l.b16 %v670
    %v1446 = vunpack.c.l.b16 %v671
    %v1447 = vunpack.c.l.b16 %v672
    %v1448 = vunpack.c.l.b16 %v673
    %v1449 = vunpack.c.l.b16 %v674
    %v1450 = vunpack.c.l.b16 %v675
    %v1451 = vunpack.c.l.b16 %v676
    %v1452 = vunpack.c.l.b16 %v677
    %v1453 = vunpack.c.l.b16 %v678
    %v1454 = vunpack.c.l.b16 %v679
    %v1455 = vunpack.c.l.b16 %v680
    %v1456 = vunpack.c.l.b16 %v681
    %v1457 = vunpack.c.l.b16 %v682
    %v1458 = vunpack.c.l.b16 %v683
    %v1459 = vunpack.c.l.b16 %v684
    %v1460 = vunpack.c.l.b16 %v685
    %v1461 = vunpack.c.l.b16 %v686
    %v1462 = vunpack.c.l.b16 %v687
    %v1463 = vunpack.c.l.b16 %v688
    %v1464 = vunpack.c.l.b16 %v689
    %v1465 = vunpack.c.l.b16 %v690
    %v1466 = vunpack.c.l.b16 %v691
    %v1467 = vunpack.c.l.b16 %v692
    %v1468 = vunpack.c.l.b16 %v693
    %v1469 = vunpack.c.l.b16 %v694
    %v1470 = vunpack.c.l.b16 %v695
    %v1471 = vunpack.c.l.b16 %v696
    %v1472 = vunpack.c.l.b16 %v697
    %v1473 = vunpack.c.l.b16 %v698
    %v1474 = vunpack.c.l.b16 %v699
    %v1475 = vunpack.c.l.b16 %v700
    %v1476 = vunpack.c.l.b16 %v701
    %v1477 = vunpack.c.l.b16 %v702
    %v1478 = vunpack.c.l.b16 %v703
    %v1479 = vunpack.c.l.b16 %v704
    %v1480 = vunpack.c.l.b16 %v705
    %v1481 = vunpack.c.l.b16 %v706
    %v1482 = vunpack.c.l.b16 %v707
    %v1483 = vunpack.c.l.b16 %v708
    %v1484 = vunpack.c.l.b16 %v709
    %v1485 = vunpack.c.l.b16 %v710
    %v1486 = vunpack.c.l.b16 %v711
    %v1487 = vunpack.c.l.b16 %v712
    %v1488 = vunpack.c.l.b16 %v713
    %v1489 = vunpack.c.l.b16 %v714
    %v1490 = vunpack.c.l.b16 %v715
    %v1491 = vunpack.c.l.b16 %v716
    %v1492 = vunpack.c.l.b16 %v717
    %v1493 = vunpack.c.l.b16 %v718
    %v1494 = vunpack.c.l.b16 %v719
    %v1495 = vunpack.c.l.b16 %v720
    %v1496 = vunpack.c.l.b16 %v721
    %v1497 = vunpack.c.l.b16 %v722
    %v1498 = vunpack.c.l.b16 %v723
    %v1499 = vunpack.c.l.b16 %v724
    %v1500 = vunpack.c.l.b16 %v725
    %v1501 = vunpack.c.l.b16 %v726
    %v1502 = vunpack.c.l.b16 %v727
    %v1503 = vunpack.c.l.b16 %v728
    %v1504 = vunpack.c.l.b16 %v729
    %v1505 = vunpack.c.l.b16 %v730
    %v1506 = vunpack.c.l.b16 %v731
    %v1507 = vunpack.c.l.b16 %v732
    %v1508 = vunpack.c.l.b16 %v733
    %v1509 = vunpack.c.l.b16 %v734
    %v1510 = vunpack.c.l.b16 %v735
    %v1511 = vunpack.c.l.b16 %v736
    %v1512 = vunpack.c.l.b16 %v737
    %v1513 = vpack.c.b16 %v1130, %v1129
    %v1514 = vpack.c.b16 %v1132, %v1131
    %v1515 = vpack.c.b16 %v1134, %v1133
    %v1516 = vpack.c.b16 %v1136, %v1135
    %v1517 = vpack.c.b16 %v1138, %v1137
    %v1518 = vpack.c.b16 %v1140, %v1139
    %v1519 = vpack.c.b16 %v1142, %v1141
    %v1520 = vpack.c.b16 %v1144, %v1143
    %v1521 = vpack.c.b16 %v1146, %v1145
    %v1522 = vpack.c.b16 %v1148, %v1147
    %v1523 = vpack.c.b16 %v1150, %v1149
    %v1524 = vpack.c.b16 %v1152, %v1151
    %v1525 = vpack.c.b16 %v1154, %v1153
    %v1526 = vpack.c.b16 %v1156, %v1155
    %v1527 = vpack.c.b16 %v1158, %v1157
    %v1528 = vpack.c.b16 %v1160, %v1159
    %v1529 = vpack.c.b16 %v1162, %v1161
    %v1530 = vpack.c.b16 %v1164, %v1163
    %v1531 = vpack.c.b16 %v1166, %v1165
    %v1532 = vpack.c.b16 %v1168, %v1167
    %v1533 = vpack.c.b16 %v1170, %v1169
    %v1534 = vpack.c.b16 %v1172, %v1171
    %v1535 = vpack.c.b16 %v1174, %v1173
    %v1536 = vpack.c.b16 %v1176, %v1175
    %v1537 = vpack.c.b16 %v1178, %v1177
    %v1538 = vpack.c.b16 %v1180, %v1179
    %v1539 = vpack.c.b16 %v1182, %v1181
    %v1540 = vpack.c.b16 %v1184, %v1183
    %v1541 = vpack.c.b16 %v1186, %v1185
    %v1542 = vpack.c.b16 %v1188, %v1187
    %v1543 = vpack.c.b16 %v1190, %v1189
    %v1544 = vpack.c.b16 %v1192, %v1191
    %v1545 = vpack.c.b16 %v1194, %v1193
    %v1546 = vpack.c.b16 %v1196, %v1195
    %v1547 = vpack.c.b16 %v1198, %v1197
    %v1548 = vpack.c.b16 %v1200, %v1199
    %v1549 = vpack.c.b16 %v1202, %v1201
    %v1550 = vpack.c.b16 %v1204, %v1203
    %v1551 = vpack.c.b16 %v1206, %v1205
    %v1552 = vpack.c.b16 %v1208, %v1207
    %v1553 = vpack.c.b16 %v1210, %v1209
    %v1554 = vpack.c.b16 %v1212, %v1211
    %v1555 = vpack.c.b16 %v1214, %v1213
    %v1556 = vpack.c.b16 %v1216, %v1215
    %v1557 = vpack.c.b16 %v1218, %v1217
    %v1558 = vpack.c.b16 %v1220, %v1219
    %v1559 = vpack.c.b16 %v1222, %v1221
    %v1560 = vpack.c.b16 %v1224, %v1223
    %v1561 = vpack.c.b16 %v1226, %v1225
    %v1562 = vpack.c.b16 %v1228, %v1227
    %v1563 = vpack.c.b16 %v1230, %v1229
    %v1564 = vpack.c.b16 %v1232, %v1231
    %v1565 = vpack.c.b16 %v1234, %v1233
    %v1566 = vpack.c.b16 %v1236, %v1235
    %v1567 = vpack.c.b16 %v1238, %v1237
    %v1568 = vpack.c.b16 %v1240, %v1239
    %v1569 = vpack.c.b16 %v1242, %v1241
    %v1570 = vpack.c.b16 %v1244, %v1243
    %v1571 = vpack.c.b16 %v1246, %v1245
    %v1572 = vpack.c.b16 %v1248, %v1247
    %v1573 = vpack.c.b16 %v1250, %v1249
    %v1574 = vpack.c.b16 %v1252, %v1251
    %v1575 = vpack.c.b16 %v1254, %v1253
    %v1576 = vpack.c.b16 %v1256, %v1255
    %v1577 = vpack.c.b16 %v1258, %v1257
    %v1578 = vpack.c.b16 %v1260, %v1259
    %v1579 = vpack.c.b16 %v1262, %v1261
    %v1580 = vpack.c.b16 %v1264, %v1263
    %v1581 = vpack.c.b16 %v1266, %v1265
    %v1582 = vpack.c.b16 %v1268, %v1267
    %v1583 = vpack.c.b16 %v1270, %v1269
    %v1584 = vpack.c.b16 %v1272, %v1271
    %v1585 = vpack.c.b16 %v1274, %v1273
    %v1586 = vpack.c.b16 %v1276, %v1275
    %v1587 = vpack.c.b16 %v1278, %v1277
    %v1588 = vpack.c.b16 %v1280, %v1279
    %v1589 = vpack.c.b16 %v1282, %v1281
    %v1590 = vpack.c.b16 %v1284, %v1283
    %v1591 = vpack.c.b16 %v1286, %v1285
    %v1592 = vpack.c.b16 %v1288, %v1287
    %v1593 = vpack.c.b16 %v1290, %v1289
    %v1594 = vpack.c.b16 %v1292, %v1291
    %v1595 = vpack.c.b16 %v1294, %v1293
    %v1596 = vpack.c.b16 %v1296, %v1295
    %v1597 = vpack.c.b16 %v1298, %v1297
    %v1598 = vpack.c.b16 %v1300, %v1299
    %v1599 = vpack.c.b16 %v1302, %v1301
    %v1600 = vpack.c.b16 %v1304, %v1303
    %v1601 = vpack.c.b16 %v1306, %v1305
    %v1602 = vpack.c.b16 %v1308, %v1307
    %v1603 = vpack.c.b16 %v1310, %v1309
    %v1604 = vpack.c.b16 %v1312, %v1311
    %v1605 = vpack.c.b16 %v1314, %v1313
    %v1606 = vpack.c.b16 %v1316, %v1315
    %v1607 = vpack.c.b16 %v1318, %v1317
    %v1608 = vpack.c.b16 %v1320, %v1319
    %v1609 = vpack.c.b16 %v1322, %v1321
    %v1610 = vpack.c.b16 %v1324, %v1323
    %v1611 = vpack.c.b16 %v1326, %v1325
    %v1612 = vpack.c.b16 %v1328, %v1327
    %v1613 = vpack.c.b16 %v1330, %v1329
    %v1614 = vpack.c.b16 %v1332, %v1331
    %v1615 = vpack.c.b16 %v1334, %v1333
    %v1616 = vpack.c.b16 %v1336, %v1335
    %v1617 = vpack.c.b16 %v1338, %v1337
    %v1618 = vpack.c.b16 %v1340, %v1339
    %v1619 = vpack.c.b16 %v1342, %v1341
    %v1620 = vpack.c.b16 %v1344, %v1343
    %v1621 = vpack.c.b16 %v1346, %v1345
    %v1622 = vpack.c.b16 %v1348, %v1347
    %v1623 = vpack.c.b16 %v1350, %v1349
    %v1624 = vpack.c.b16 %v1352, %v1351
    %v1625 = vpack.c.b16 %v1354, %v1353
    %v1626 = vpack.c.b16 %v1356, %v1355
    %v1627 = vpack.c.b16 %v1358, %v1357
    %v1628 = vpack.c.b16 %v1360, %v1359
    %v1629 = vpack.c.b16 %v1362, %v1361
    %v1630 = vpack.c.b16 %v1364, %v1363
    %v1631 = vpack.c.b16 %v1366, %v1365
    %v1632 = vpack.c.b16 %v1368, %v1367
    %v1633 = vpack.c.b16 %v1370, %v1369
    %v1634 = vpack.c.b16 %v1372, %v1371
    %v1635 = vpack.c.b16 %v1374, %v1373
    %v1636 = vpack.c.b16 %v1376, %v1375
    %v1637 = vpack.c.b16 %v1378, %v1377
    %v1638 = vpack.c.b16 %v1380, %v1379
    %v1639 = vpack.c.b16 %v1382, %v1381
    %v1640 = vpack.c.b16 %v1384, %v1383
    %v1641 = vpack.c.b16 %v1386, %v1385
    %v1642 = vpack.c.b16 %v1388, %v1387
    %v1643 = vpack.c.b16 %v1390, %v1389
    %v1644 = vpack.c.b16 %v1392, %v1391
    %v1645 = vpack.c.b16 %v1394, %v1393
    %v1646 = vpack.c.b16 %v1396, %v1395
    %v1647 = vpack.c.b16 %v1398, %v1397
    %v1648 = vpack.c.b16 %v1400, %v1399
    %v1649 = vpack.c.b16 %v1402, %v1401
    %v1650 = vpack.c.b16 %v1404, %v1403
    %v1651 = vpack.c.b16 %v1406, %v1405
    %v1652 = vpack.c.b16 %v1408, %v1407
    %v1653 = vpack.c.b16 %v1410, %v1409
    %v1654 = vpack.c.b16 %v1412, %v1411
    %v1655 = vpack.c.b16 %v1414, %v1413
    %v1656 = vpack.c.b16 %v1416, %v1415
    %v1657 = vpack.c.b16 %v1418, %v1417
    %v1658 = vpack.c.b16 %v1420, %v1419
    %v1659 = vpack.c.b16 %v1422, %v1421
    %v1660 = vpack.c.b16 %v1424, %v1423
    %v1661 = vpack.c.b16 %v1426, %v1425
    %v1662 = vpack.c.b16 %v1428, %v1427
    %v1663 = vpack.c.b16 %v1430, %v1429
    %v1664 = vpack.c.b16 %v1432, %v1431
    %v1665 = vpack.c.b16 %v1434, %v1433
    %v1666 = vpack.c.b16 %v1436, %v1435
    %v1667 = vpack.c.b16 %v1438, %v1437
    %v1668 = vpack.c.b16 %v1440, %v1439
    %v1669 = vpack.c.b16 %v1442, %v1441
    %v1670 = vpack.c.b16 %v1444, %v1443
    %v1671 = vpack.c.b16 %v1446, %v1445
    %v1672 = vpack.c.b16 %v1448, %v1447
    %v1673 = vpack.c.b16 %v1450, %v1449
    %v1674 = vpack.c.b16 %v1452, %v1451
    %v1675 = vpack.c.b16 %v1454, %v1453
    %v1676 = vpack.c.b16 %v1456, %v1455
    %v1677 = vpack.c.b16 %v1458, %v1457
    %v1678 = vpack.c.b16 %v1460, %v1459
    %v1679 = vpack.c.b16 %v1462, %v1461
    %v1680 = vpack.c.b16 %v1464, %v1463
    %v1681 = vpack.c.b16 %v1466, %v1465
    %v1682 = vpack.c.b16 %v1468, %v1467
    %v1683 = vpack.c.b16 %v1470, %v1469
    %v1684 = vpack.c.b16 %v1472, %v1471
    %v1685 = vpack.c.b16 %v1474, %v1473
    %v1686 = vpack.c.b16 %v1476, %v1475
    %v1687 = vpack.c.b16 %v1478, %v1477
    %v1688 = vpack.c.b16 %v1480, %v1479
    %v1689 = vpack.c.b16 %v1482, %v1481
    %v1690 = vpack.c.b16 %v1484, %v1483
    %v1691 = vpack.c.b16 %v1486, %v1485
    %v1692 = vpack.c.b16 %v1488, %v1487
    %v1693 = vpack.c.b16 %v1490, %v1489
    %v1694 = vpack.c.b16 %v1492, %v1491
    %v1695 = vpack.c.b16 %v1494, %v1493
    %v1696 = vpack.c.b16 %v1496, %v1495
    %v1697 = vpack.c.b16 %v1498, %v1497
    %v1698 = vpack.c.b16 %v1500, %v1499
    %v1699 = vpack.c.b16 %v1502, %v1501
    %v1700 = vpack.c.b16 %v1504, %v1503
    %v1701 = vpack.c.b16 %v1506, %v1505
    %v1702 = vpack.c.b16 %v1508, %v1507
    %v1703 = vpack.c.b16 %v1510, %v1509
    %v1704 = vpack.c.b16 %v1512, %v1511
    %1897 = vmatprep.subr.bf16.mxu0 0
    %1898 = vmatpush1.bf16.msra.mxu0 %v1520
    %1899 = vmatprep.subr.bf16.mxu0 0
    %1900 = vmatpush1.bf16.msra.mxu0 %v1519
    %1901 = vmatprep.subr.bf16.mxu0 0
    %1902 = vmatpush1.bf16.msra.mxu0 %v1518
    %1903 = vmatprep.subr.bf16.mxu0 0
    %1904 = vmatpush1.bf16.msra.mxu0 %v1517
    %1905 = vmatprep.subr.bf16.mxu0 0
    %1906 = vmatpush1.bf16.msra.mxu0 %v1516
    %1907 = vmatprep.subr.bf16.mxu0 0
    %1908 = vmatpush1.bf16.msra.mxu0 %v1515
    %1909 = vmatprep.subr.bf16.mxu0 0
    %1910 = vmatpush1.bf16.msra.mxu0 %v1514
    %1911 = vmatprep.subr.bf16.mxu0 0
    %1912 = vmatpush1.bf16.msra.mxu0 %v1513
    %1913 = vmatprep.subr.bf16.mxu0 0
    %1914 = vmatpush2.bf16.msra.mxu0 %v1528
    %1915 = vmatprep.subr.bf16.mxu0 0
    %1916 = vmatpush2.bf16.msra.mxu0 %v1527
    %1917 = vmatprep.subr.bf16.mxu0 0
    %1918 = vmatpush2.bf16.msra.mxu0 %v1526
    %1919 = vmatprep.subr.bf16.mxu0 0
    %1920 = vmatpush2.bf16.msra.mxu0 %v1525
    %1921 = vmatprep.subr.bf16.mxu0 0
    %1922 = vmatpush2.bf16.msra.mxu0 %v1524
    %1923 = vmatprep.subr.bf16.mxu0 0
    %1924 = vmatpush2.bf16.msra.mxu0 %v1523
    %1925 = vmatprep.subr.bf16.mxu0 0
    %1926 = vmatpush2.bf16.msra.mxu0 %v1522
    %1927 = vmatprep.subr.bf16.mxu0 0
    %1928 = vmatpush2.bf16.msra.mxu0 %v1521
    %1929 = vmatprep.mubr.bf16.mxu0 %v331
    %1930 = vmatmul.mubr.bf16.gmra.mxu0 %v330
    %v1931 = vpop.f32.mrf.mxu0
    %v1932 = vadd.f32 %v743, %v1931
    %v1933 = vpop.f32.mrf.mxu0
    %v1934 = vpop.f32.mrf.mxu0
    %v1935 = vpop.f32.mrf.mxu0
    %1936 = vdwg.mxu0
    %1937 = vmatprep.subr.bf16.mxu0 0
    %1938 = vmatpush1.bf16.msra.mxu0 %v1536
    %1939 = vmatprep.subr.bf16.mxu0 0
    %1940 = vmatpush1.bf16.msra.mxu0 %v1535
    %1941 = vmatprep.subr.bf16.mxu0 0
    %1942 = vmatpush1.bf16.msra.mxu0 %v1534
    %1943 = vmatprep.subr.bf16.mxu0 0
    %1944 = vmatpush1.bf16.msra.mxu0 %v1533
    %1945 = vmatprep.subr.bf16.mxu0 0
    %1946 = vmatpush1.bf16.msra.mxu0 %v1532
    %1947 = vmatprep.subr.bf16.mxu0 0
    %1948 = vmatpush1.bf16.msra.mxu0 %v1531
    %1949 = vmatprep.subr.bf16.mxu0 0
    %1950 = vmatpush1.bf16.msra.mxu0 %v1530
    %1951 = vmatprep.subr.bf16.mxu0 0
    %1952 = vmatpush1.bf16.msra.mxu0 %v1529
    %1953 = vmatprep.subr.bf16.mxu0 0
    %1954 = vmatpush2.bf16.msra.mxu0 %v1544
    %1955 = vmatprep.subr.bf16.mxu0 0
    %1956 = vmatpush2.bf16.msra.mxu0 %v1543
    %1957 = vmatprep.subr.bf16.mxu0 0
    %1958 = vmatpush2.bf16.msra.mxu0 %v1542
    %1959 = vmatprep.subr.bf16.mxu0 0
    %1960 = vmatpush2.bf16.msra.mxu0 %v1541
    %1961 = vmatprep.subr.bf16.mxu0 0
    %1962 = vmatpush2.bf16.msra.mxu0 %v1540
    %1963 = vmatprep.subr.bf16.mxu0 0
    %1964 = vmatpush2.bf16.msra.mxu0 %v1539
    %1965 = vmatprep.subr.bf16.mxu0 0
    %1966 = vmatpush2.bf16.msra.mxu0 %v1538
    %1967 = vmatprep.subr.bf16.mxu0 0
    %1968 = vmatpush2.bf16.msra.mxu0 %v1537
    %1969 = vmatprep.mubr.bf16.mxu0 %v333
    %1970 = vmatmul.mubr.bf16.gmra.mxu0 %v332
    %v1971 = vpop.f32.mrf.mxu0
    %v1972 = vadd.f32 %v1932, %v1971
    %v1973 = vpop.f32.mrf.mxu0
    %v1974 = vpop.f32.mrf.mxu0
    %v1975 = vpop.f32.mrf.mxu0
    %1976 = vdwg.mxu0
    %1977 = vmatprep.subr.bf16.mxu0 0
    %1978 = vmatpush1.bf16.msra.mxu0 %v1552
    %1979 = vmatprep.subr.bf16.mxu0 0
    %1980 = vmatpush1.bf16.msra.mxu0 %v1551
    %1981 = vmatprep.subr.bf16.mxu0 0
    %1982 = vmatpush1.bf16.msra.mxu0 %v1550
    %1983 = vmatprep.subr.bf16.mxu0 0
    %1984 = vmatpush1.bf16.msra.mxu0 %v1549
    %1985 = vmatprep.subr.bf16.mxu0 0
    %1986 = vmatpush1.bf16.msra.mxu0 %v1548
    %1987 = vmatprep.subr.bf16.mxu0 0
    %1988 = vmatpush1.bf16.msra.mxu0 %v1547
    %1989 = vmatprep.subr.bf16.mxu0 0
    %1990 = vmatpush1.bf16.msra.mxu0 %v1546
    %1991 = vmatprep.subr.bf16.mxu0 0
    %1992 = vmatpush1.bf16.msra.mxu0 %v1545
    %1993 = vmatprep.subr.bf16.mxu0 0
    %1994 = vmatpush2.bf16.msra.mxu0 %v1560
    %1995 = vmatprep.subr.bf16.mxu0 0
    %1996 = vmatpush2.bf16.msra.mxu0 %v1559
    %1997 = vmatprep.subr.bf16.mxu0 0
    %1998 = vmatpush2.bf16.msra.mxu0 %v1558
    %1999 = vmatprep.subr.bf16.mxu0 0
    %2000 = vmatpush2.bf16.msra.mxu0 %v1557
    %2001 = vmatprep.subr.bf16.mxu0 0
    %2002 = vmatpush2.bf16.msra.mxu0 %v1556
    %2003 = vmatprep.subr.bf16.mxu0 0
    %2004 = vmatpush2.bf16.msra.mxu0 %v1555
    %2005 = vmatprep.subr.bf16.mxu0 0
    %2006 = vmatpush2.bf16.msra.mxu0 %v1554
    %2007 = vmatprep.subr.bf16.mxu0 0
    %2008 = vmatpush2.bf16.msra.mxu0 %v1553
    %2009 = vmatprep.mubr.bf16.mxu0 %v335
    %2010 = vmatmul.mubr.bf16.gmra.mxu0 %v334
    %v2011 = vpop.f32.mrf.mxu0
    %v2012 = vadd.f32 %v1972, %v2011
    %v2013 = vpop.f32.mrf.mxu0
    %v2014 = vpop.f32.mrf.mxu0
    %v2015 = vpop.f32.mrf.mxu0
    %2016 = vdwg.mxu0
    %2017 = vmatprep.subr.bf16.mxu0 0
    %2018 = vmatpush1.bf16.msra.mxu0 %v1568
    %2019 = vmatprep.subr.bf16.mxu0 0
    %2020 = vmatpush1.bf16.msra.mxu0 %v1567
    %2021 = vmatprep.subr.bf16.mxu0 0
    %2022 = vmatpush1.bf16.msra.mxu0 %v1566
    %2023 = vmatprep.subr.bf16.mxu0 0
    %2024 = vmatpush1.bf16.msra.mxu0 %v1565
    %2025 = vmatprep.subr.bf16.mxu0 0
    %2026 = vmatpush1.bf16.msra.mxu0 %v1564
    %2027 = vmatprep.subr.bf16.mxu0 0
    %2028 = vmatpush1.bf16.msra.mxu0 %v1563
    %2029 = vmatprep.subr.bf16.mxu0 0
    %2030 = vmatpush1.bf16.msra.mxu0 %v1562
    %2031 = vmatprep.subr.bf16.mxu0 0
    %2032 = vmatpush1.bf16.msra.mxu0 %v1561
    %2033 = vmatprep.subr.bf16.mxu0 0
    %2034 = vmatpush2.bf16.msra.mxu0 %v1576
    %2035 = vmatprep.subr.bf16.mxu0 0
    %2036 = vmatpush2.bf16.msra.mxu0 %v1575
    %2037 = vmatprep.subr.bf16.mxu0 0
    %2038 = vmatpush2.bf16.msra.mxu0 %v1574
    %2039 = vmatprep.subr.bf16.mxu0 0
    %2040 = vmatpush2.bf16.msra.mxu0 %v1573
    %2041 = vmatprep.subr.bf16.mxu0 0
    %2042 = vmatpush2.bf16.msra.mxu0 %v1572
    %2043 = vmatprep.subr.bf16.mxu0 0
    %2044 = vmatpush2.bf16.msra.mxu0 %v1571
    %2045 = vmatprep.subr.bf16.mxu0 0
    %2046 = vmatpush2.bf16.msra.mxu0 %v1570
    %2047 = vmatprep.subr.bf16.mxu0 0
    %2048 = vmatpush2.bf16.msra.mxu0 %v1569
    %2049 = vmatprep.mubr.bf16.mxu0 %v337
    %2050 = vmatmul.mubr.bf16.gmra.mxu0 %v336
    %v2051 = vpop.f32.mrf.mxu0
    %v2052 = vadd.f32 %v2012, %v2051
    %v2053 = vpop.f32.mrf.mxu0
    %v2054 = vpop.f32.mrf.mxu0
    %v2055 = vpop.f32.mrf.mxu0
    %2056 = vdwg.mxu0
    %2057 = vmatprep.subr.bf16.mxu0 0
    %2058 = vmatpush1.bf16.msra.mxu0 %v1584
    %2059 = vmatprep.subr.bf16.mxu0 0
    %2060 = vmatpush1.bf16.msra.mxu0 %v1583
    %2061 = vmatprep.subr.bf16.mxu0 0
    %2062 = vmatpush1.bf16.msra.mxu0 %v1582
    %2063 = vmatprep.subr.bf16.mxu0 0
    %2064 = vmatpush1.bf16.msra.mxu0 %v1581
    %2065 = vmatprep.subr.bf16.mxu0 0
    %2066 = vmatpush1.bf16.msra.mxu0 %v1580
    %2067 = vmatprep.subr.bf16.mxu0 0
    %2068 = vmatpush1.bf16.msra.mxu0 %v1579
    %2069 = vmatprep.subr.bf16.mxu0 0
    %2070 = vmatpush1.bf16.msra.mxu0 %v1578
    %2071 = vmatprep.subr.bf16.mxu0 0
    %2072 = vmatpush1.bf16.msra.mxu0 %v1577
    %2073 = vmatprep.subr.bf16.mxu0 0
    %2074 = vmatpush2.bf16.msra.mxu0 %v1592
    %2075 = vmatprep.subr.bf16.mxu0 0
    %2076 = vmatpush2.bf16.msra.mxu0 %v1591
    %2077 = vmatprep.subr.bf16.mxu0 0
    %2078 = vmatpush2.bf16.msra.mxu0 %v1590
    %2079 = vmatprep.subr.bf16.mxu0 0
    %2080 = vmatpush2.bf16.msra.mxu0 %v1589
    %2081 = vmatprep.subr.bf16.mxu0 0
    %2082 = vmatpush2.bf16.msra.mxu0 %v1588
    %2083 = vmatprep.subr.bf16.mxu0 0
    %2084 = vmatpush2.bf16.msra.mxu0 %v1587
    %2085 = vmatprep.subr.bf16.mxu0 0
    %2086 = vmatpush2.bf16.msra.mxu0 %v1586
    %2087 = vmatprep.subr.bf16.mxu0 0
    %2088 = vmatpush2.bf16.msra.mxu0 %v1585
    %2089 = vmatprep.mubr.bf16.mxu0 %v339
    %2090 = vmatmul.mubr.bf16.gmra.mxu0 %v338
    %v2091 = vpop.f32.mrf.mxu0
    %v2092 = vadd.f32 %v2052, %v2091
    %v2093 = vpop.f32.mrf.mxu0
    %v2094 = vpop.f32.mrf.mxu0
    %v2095 = vpop.f32.mrf.mxu0
    %2096 = vdwg.mxu0
    %2097 = vmatprep.subr.bf16.mxu0 0
    %2098 = vmatpush1.bf16.msra.mxu0 %v1600
    %2099 = vmatprep.subr.bf16.mxu0 0
    %2100 = vmatpush1.bf16.msra.mxu0 %v1599
    %2101 = vmatprep.subr.bf16.mxu0 0
    %2102 = vmatpush1.bf16.msra.mxu0 %v1598
    %2103 = vmatprep.subr.bf16.mxu0 0
    %2104 = vmatpush1.bf16.msra.mxu0 %v1597
    %2105 = vmatprep.subr.bf16.mxu0 0
    %2106 = vmatpush1.bf16.msra.mxu0 %v1596
    %2107 = vmatprep.subr.bf16.mxu0 0
    %2108 = vmatpush1.bf16.msra.mxu0 %v1595
    %2109 = vmatprep.subr.bf16.mxu0 0
    %2110 = vmatpush1.bf16.msra.mxu0 %v1594
    %2111 = vmatprep.subr.bf16.mxu0 0
    %2112 = vmatpush1.bf16.msra.mxu0 %v1593
    %2113 = vmatprep.subr.bf16.mxu0 0
    %2114 = vmatpush2.bf16.msra.mxu0 %v1608
    %2115 = vmatprep.subr.bf16.mxu0 0
    %2116 = vmatpush2.bf16.msra.mxu0 %v1607
    %2117 = vmatprep.subr.bf16.mxu0 0
    %2118 = vmatpush2.bf16.msra.mxu0 %v1606
    %2119 = vmatprep.subr.bf16.mxu0 0
    %2120 = vmatpush2.bf16.msra.mxu0 %v1605
    %2121 = vmatprep.subr.bf16.mxu0 0
    %2122 = vmatpush2.bf16.msra.mxu0 %v1604
    %2123 = vmatprep.subr.bf16.mxu0 0
    %2124 = vmatpush2.bf16.msra.mxu0 %v1603
    %2125 = vmatprep.subr.bf16.mxu0 0
    %2126 = vmatpush2.bf16.msra.mxu0 %v1602
    %2127 = vmatprep.subr.bf16.mxu0 0
    %2128 = vmatpush2.bf16.msra.mxu0 %v1601
    %2129 = vmatprep.mubr.bf16.mxu0 %v341
    %2130 = vmatmul.mubr.bf16.gmra.mxu0 %v340
    %v2131 = vpop.f32.mrf.mxu0
    %v2132 = vadd.f32 %v2092, %v2131
    %v2133 = vpop.f32.mrf.mxu0
    %v2134 = vpop.f32.mrf.mxu0
    %v2135 = vpop.f32.mrf.mxu0
    %2136 = vdwg.mxu0
    %2137 = vmatprep.subr.bf16.mxu0 0
    %2138 = vmatpush1.bf16.msra.mxu0 %v1616
    %2139 = vmatprep.subr.bf16.mxu0 0
    %2140 = vmatpush1.bf16.msra.mxu0 %v1615
    %2141 = vmatprep.subr.bf16.mxu0 0
    %2142 = vmatpush1.bf16.msra.mxu0 %v1614
    %2143 = vmatprep.subr.bf16.mxu0 0
    %2144 = vmatpush1.bf16.msra.mxu0 %v1613
    %2145 = vmatprep.subr.bf16.mxu0 0
    %2146 = vmatpush1.bf16.msra.mxu0 %v1612
    %2147 = vmatprep.subr.bf16.mxu0 0
    %2148 = vmatpush1.bf16.msra.mxu0 %v1611
    %2149 = vmatprep.subr.bf16.mxu0 0
    %2150 = vmatpush1.bf16.msra.mxu0 %v1610
    %2151 = vmatprep.subr.bf16.mxu0 0
    %2152 = vmatpush1.bf16.msra.mxu0 %v1609
    %2153 = vmatprep.subr.bf16.mxu0 0
    %2154 = vmatpush2.bf16.msra.mxu0 %v1624
    %2155 = vmatprep.subr.bf16.mxu0 0
    %2156 = vmatpush2.bf16.msra.mxu0 %v1623
    %2157 = vmatprep.subr.bf16.mxu0 0
    %2158 = vmatpush2.bf16.msra.mxu0 %v1622
    %2159 = vmatprep.subr.bf16.mxu0 0
    %2160 = vmatpush2.bf16.msra.mxu0 %v1621
    %2161 = vmatprep.subr.bf16.mxu0 0
    %2162 = vmatpush2.bf16.msra.mxu0 %v1620
    %2163 = vmatprep.subr.bf16.mxu0 0
    %2164 = vmatpush2.bf16.msra.mxu0 %v1619
    %2165 = vmatprep.subr.bf16.mxu0 0
    %2166 = vmatpush2.bf16.msra.mxu0 %v1618
    %2167 = vmatprep.subr.bf16.mxu0 0
    %2168 = vmatpush2.bf16.msra.mxu0 %v1617
    %2169 = vmatprep.mubr.bf16.mxu0 %v343
    %2170 = vmatmul.mubr.bf16.gmra.mxu0 %v342
    %v2171 = vpop.f32.mrf.mxu0
    %v2172 = vadd.f32 %v2132, %v2171
    %v2173 = vpop.f32.mrf.mxu0
    %v2174 = vpop.f32.mrf.mxu0
    %v2175 = vpop.f32.mrf.mxu0
    %2176 = vdwg.mxu0
    %2177 = vmatprep.subr.bf16.mxu0 0
    %2178 = vmatpush1.bf16.msra.mxu0 %v1632
    %2179 = vmatprep.subr.bf16.mxu0 0
    %2180 = vmatpush1.bf16.msra.mxu0 %v1631
    %2181 = vmatprep.subr.bf16.mxu0 0
    %2182 = vmatpush1.bf16.msra.mxu0 %v1630
    %2183 = vmatprep.subr.bf16.mxu0 0
    %2184 = vmatpush1.bf16.msra.mxu0 %v1629
    %2185 = vmatprep.subr.bf16.mxu0 0
    %2186 = vmatpush1.bf16.msra.mxu0 %v1628
    %2187 = vmatprep.subr.bf16.mxu0 0
    %2188 = vmatpush1.bf16.msra.mxu0 %v1627
    %2189 = vmatprep.subr.bf16.mxu0 0
    %2190 = vmatpush1.bf16.msra.mxu0 %v1626
    %2191 = vmatprep.subr.bf16.mxu0 0
    %2192 = vmatpush1.bf16.msra.mxu0 %v1625
    %2193 = vmatprep.subr.bf16.mxu0 0
    %2194 = vmatpush2.bf16.msra.mxu0 %v1640
    %2195 = vmatprep.subr.bf16.mxu0 0
    %2196 = vmatpush2.bf16.msra.mxu0 %v1639
    %2197 = vmatprep.subr.bf16.mxu0 0
    %2198 = vmatpush2.bf16.msra.mxu0 %v1638
    %2199 = vmatprep.subr.bf16.mxu0 0
    %2200 = vmatpush2.bf16.msra.mxu0 %v1637
    %2201 = vmatprep.subr.bf16.mxu0 0
    %2202 = vmatpush2.bf16.msra.mxu0 %v1636
    %2203 = vmatprep.subr.bf16.mxu0 0
    %2204 = vmatpush2.bf16.msra.mxu0 %v1635
    %2205 = vmatprep.subr.bf16.mxu0 0
    %2206 = vmatpush2.bf16.msra.mxu0 %v1634
    %2207 = vmatprep.subr.bf16.mxu0 0
    %2208 = vmatpush2.bf16.msra.mxu0 %v1633
    %2209 = vmatprep.mubr.bf16.mxu0 %v345
    %2210 = vmatmul.mubr.bf16.gmra.mxu0 %v344
    %v2211 = vpop.f32.mrf.mxu0
    %v2212 = vadd.f32 %v2172, %v2211
    %v2213 = vpop.f32.mrf.mxu0
    %v2214 = vpop.f32.mrf.mxu0
    %v2215 = vpop.f32.mrf.mxu0
    %2216 = vdwg.mxu0
    %2217 = vmatprep.subr.bf16.mxu0 0
    %2218 = vmatpush1.bf16.msra.mxu0 %v1648
    %2219 = vmatprep.subr.bf16.mxu0 0
    %2220 = vmatpush1.bf16.msra.mxu0 %v1647
    %2221 = vmatprep.subr.bf16.mxu0 0
    %2222 = vmatpush1.bf16.msra.mxu0 %v1646
    %2223 = vmatprep.subr.bf16.mxu0 0
    %2224 = vmatpush1.bf16.msra.mxu0 %v1645
    %2225 = vmatprep.subr.bf16.mxu0 0
    %2226 = vmatpush1.bf16.msra.mxu0 %v1644
    %2227 = vmatprep.subr.bf16.mxu0 0
    %2228 = vmatpush1.bf16.msra.mxu0 %v1643
    %2229 = vmatprep.subr.bf16.mxu0 0
    %2230 = vmatpush1.bf16.msra.mxu0 %v1642
    %2231 = vmatprep.subr.bf16.mxu0 0
    %2232 = vmatpush1.bf16.msra.mxu0 %v1641
    %2233 = vmatprep.subr.bf16.mxu0 0
    %2234 = vmatpush2.bf16.msra.mxu0 %v1656
    %2235 = vmatprep.subr.bf16.mxu0 0
    %2236 = vmatpush2.bf16.msra.mxu0 %v1655
    %2237 = vmatprep.subr.bf16.mxu0 0
    %2238 = vmatpush2.bf16.msra.mxu0 %v1654
    %2239 = vmatprep.subr.bf16.mxu0 0
    %2240 = vmatpush2.bf16.msra.mxu0 %v1653
    %2241 = vmatprep.subr.bf16.mxu0 0
    %2242 = vmatpush2.bf16.msra.mxu0 %v1652
    %2243 = vmatprep.subr.bf16.mxu0 0
    %2244 = vmatpush2.bf16.msra.mxu0 %v1651
    %2245 = vmatprep.subr.bf16.mxu0 0
    %2246 = vmatpush2.bf16.msra.mxu0 %v1650
    %2247 = vmatprep.subr.bf16.mxu0 0
    %2248 = vmatpush2.bf16.msra.mxu0 %v1649
    %2249 = vmatprep.mubr.bf16.mxu0 %v347
    %2250 = vmatmul.mubr.bf16.gmra.mxu0 %v346
    %v2251 = vpop.f32.mrf.mxu0
    %v2252 = vadd.f32 %v2212, %v2251
    %v2253 = vpop.f32.mrf.mxu0
    %v2254 = vpop.f32.mrf.mxu0
    %v2255 = vpop.f32.mrf.mxu0
    %2256 = vdwg.mxu0
    %2257 = vmatprep.subr.bf16.mxu0 0
    %2258 = vmatpush1.bf16.msra.mxu0 %v1664
    %2259 = vmatprep.subr.bf16.mxu0 0
    %2260 = vmatpush1.bf16.msra.mxu0 %v1663
    %2261 = vmatprep.subr.bf16.mxu0 0
    %2262 = vmatpush1.bf16.msra.mxu0 %v1662
    %2263 = vmatprep.subr.bf16.mxu0 0
    %2264 = vmatpush1.bf16.msra.mxu0 %v1661
    %2265 = vmatprep.subr.bf16.mxu0 0
    %2266 = vmatpush1.bf16.msra.mxu0 %v1660
    %2267 = vmatprep.subr.bf16.mxu0 0
    %2268 = vmatpush1.bf16.msra.mxu0 %v1659
    %2269 = vmatprep.subr.bf16.mxu0 0
    %2270 = vmatpush1.bf16.msra.mxu0 %v1658
    %2271 = vmatprep.subr.bf16.mxu0 0
    %2272 = vmatpush1.bf16.msra.mxu0 %v1657
    %2273 = vmatprep.subr.bf16.mxu0 0
    %2274 = vmatpush2.bf16.msra.mxu0 %v1672
    %2275 = vmatprep.subr.bf16.mxu0 0
    %2276 = vmatpush2.bf16.msra.mxu0 %v1671
    %2277 = vmatprep.subr.bf16.mxu0 0
    %2278 = vmatpush2.bf16.msra.mxu0 %v1670
    %2279 = vmatprep.subr.bf16.mxu0 0
    %2280 = vmatpush2.bf16.msra.mxu0 %v1669
    %2281 = vmatprep.subr.bf16.mxu0 0
    %2282 = vmatpush2.bf16.msra.mxu0 %v1668
    %2283 = vmatprep.subr.bf16.mxu0 0
    %2284 = vmatpush2.bf16.msra.mxu0 %v1667
    %2285 = vmatprep.subr.bf16.mxu0 0
    %2286 = vmatpush2.bf16.msra.mxu0 %v1666
    %2287 = vmatprep.subr.bf16.mxu0 0
    %2288 = vmatpush2.bf16.msra.mxu0 %v1665
    %2289 = vmatprep.mubr.bf16.mxu0 %v349
    %2290 = vmatmul.mubr.bf16.gmra.mxu0 %v348
    %v2291 = vpop.f32.mrf.mxu0
    %v2292 = vadd.f32 %v2252, %v2291
    %v2293 = vpop.f32.mrf.mxu0
    %v2294 = vpop.f32.mrf.mxu0
    %v2295 = vpop.f32.mrf.mxu0
    %2296 = vdwg.mxu0
    %2297 = vmatprep.subr.bf16.mxu0 0
    %2298 = vmatpush1.bf16.msra.mxu0 %v1680
    %2299 = vmatprep.subr.bf16.mxu0 0
    %2300 = vmatpush1.bf16.msra.mxu0 %v1679
    %2301 = vmatprep.subr.bf16.mxu0 0
    %2302 = vmatpush1.bf16.msra.mxu0 %v1678
    %2303 = vmatprep.subr.bf16.mxu0 0
    %2304 = vmatpush1.bf16.msra.mxu0 %v1677
    %2305 = vmatprep.subr.bf16.mxu0 0
    %2306 = vmatpush1.bf16.msra.mxu0 %v1676
    %2307 = vmatprep.subr.bf16.mxu0 0
    %2308 = vmatpush1.bf16.msra.mxu0 %v1675
    %2309 = vmatprep.subr.bf16.mxu0 0
    %2310 = vmatpush1.bf16.msra.mxu0 %v1674
    %2311 = vmatprep.subr.bf16.mxu0 0
    %2312 = vmatpush1.bf16.msra.mxu0 %v1673
    %2313 = vmatprep.subr.bf16.mxu0 0
    %2314 = vmatpush2.bf16.msra.mxu0 %v1688
    %2315 = vmatprep.subr.bf16.mxu0 0
    %2316 = vmatpush2.bf16.msra.mxu0 %v1687
    %2317 = vmatprep.subr.bf16.mxu0 0
    %2318 = vmatpush2.bf16.msra.mxu0 %v1686
    %2319 = vmatprep.subr.bf16.mxu0 0
    %2320 = vmatpush2.bf16.msra.mxu0 %v1685
    %2321 = vmatprep.subr.bf16.mxu0 0
    %2322 = vmatpush2.bf16.msra.mxu0 %v1684
    %2323 = vmatprep.subr.bf16.mxu0 0
    %2324 = vmatpush2.bf16.msra.mxu0 %v1683
    %2325 = vmatprep.subr.bf16.mxu0 0
    %2326 = vmatpush2.bf16.msra.mxu0 %v1682
    %2327 = vmatprep.subr.bf16.mxu0 0
    %2328 = vmatpush2.bf16.msra.mxu0 %v1681
    %2329 = vmatprep.mubr.bf16.mxu0 %v351
    %2330 = vmatmul.mubr.bf16.gmra.mxu0 %v350
    %v2331 = vpop.f32.mrf.mxu0
    %v2332 = vadd.f32 %v2292, %v2331
    %v2333 = vpop.f32.mrf.mxu0
    %v2334 = vpop.f32.mrf.mxu0
    %v2335 = vpop.f32.mrf.mxu0
    %2336 = vdwg.mxu0
    %2337 = vmatprep.subr.bf16.mxu0 0
    %2338 = vmatpush1.bf16.msra.mxu0 %v1696
    %2339 = vmatprep.subr.bf16.mxu0 0
    %2340 = vmatpush1.bf16.msra.mxu0 %v1695
    %2341 = vmatprep.subr.bf16.mxu0 0
    %2342 = vmatpush1.bf16.msra.mxu0 %v1694
    %2343 = vmatprep.subr.bf16.mxu0 0
    %2344 = vmatpush1.bf16.msra.mxu0 %v1693
    %2345 = vmatprep.subr.bf16.mxu0 0
    %2346 = vmatpush1.bf16.msra.mxu0 %v1692
    %2347 = vmatprep.subr.bf16.mxu0 0
    %2348 = vmatpush1.bf16.msra.mxu0 %v1691
    %2349 = vmatprep.subr.bf16.mxu0 0
    %2350 = vmatpush1.bf16.msra.mxu0 %v1690
    %2351 = vmatprep.subr.bf16.mxu0 0
    %2352 = vmatpush1.bf16.msra.mxu0 %v1689
    %2353 = vmatprep.subr.bf16.mxu0 0
    %2354 = vmatpush2.bf16.msra.mxu0 %v1704
    %2355 = vmatprep.subr.bf16.mxu0 0
    %2356 = vmatpush2.bf16.msra.mxu0 %v1703
    %2357 = vmatprep.subr.bf16.mxu0 0
    %2358 = vmatpush2.bf16.msra.mxu0 %v1702
    %2359 = vmatprep.subr.bf16.mxu0 0
    %2360 = vmatpush2.bf16.msra.mxu0 %v1701
    %2361 = vmatprep.subr.bf16.mxu0 0
    %2362 = vmatpush2.bf16.msra.mxu0 %v1700
    %2363 = vmatprep.subr.bf16.mxu0 0
    %2364 = vmatpush2.bf16.msra.mxu0 %v1699
    %2365 = vmatprep.subr.bf16.mxu0 0
    %2366 = vmatpush2.bf16.msra.mxu0 %v1698
    %2367 = vmatprep.subr.bf16.mxu0 0
    %2368 = vmatpush2.bf16.msra.mxu0 %v1697
    %2369 = vmatprep.mubr.bf16.mxu0 %v353
    %2370 = vmatmul.mubr.bf16.gmra.mxu0 %v352
    %v2371 = vpop.f32.mrf.mxu0
    %v2372 = vadd.f32 %v2332, %v2371
    %v2373 = vpop.f32.mrf.mxu0
    %v2374 = vpop.f32.mrf.mxu0
    %v2375 = vpop.f32.mrf.mxu0
    %2376 = vdwg.mxu0
    %v2377 = vmax.f32 %v2372, 0.0
    %v2378 = vpack.c.bf16 %v2377, %v2377
    %v2379 = vld [vmem:[%s3] sm:$0xf]
    %v2380 = vld [vmem:[%s3 + $0x4] sm:$0xf]
    %v2381 = vld [vmem:[%s3 + $0x8] sm:$0xf]
    %v2382 = vld [vmem:[%s3 + $0xc] sm:$0xf]
    %v2383 = vld [vmem:[%s3 + $0x10] sm:$0xf]
    %v2384 = vld [vmem:[%s3 + $0x14] sm:$0xf]
    %v2385 = vld [vmem:[%s3 + $0x18] sm:$0xf]
    %v2386 = vld [vmem:[%s3 + $0x1c] sm:$0xf]
    %v2387 = vld [vmem:[%s3 + $0x20] sm:$0xf]
    %v2388 = vld [vmem:[%s3 + $0x24] sm:$0xf]
    %v2389 = vld [vmem:[%s3 + $0x28] sm:$0xf]
    %v2390 = vld [vmem:[%s3 + $0x2c] sm:$0xf]
    %v2391 = vld [vmem:[%s3 + $0x30] sm:$0xf]
    %v2392 = vld [vmem:[%s3 + $0x34] sm:$0xf]
    %v2393 = vld [vmem:[%s3 + $0x38] sm:$0xf]
    %v2394 = vld [vmem:[%s3 + $0x3c] sm:$0xf]
    %v2395 = vld [vmem:[%s4] sm:$0x1]
    %v2397 = vlaneseq
    %v2398 = vshrl.u32 %v2397, 7
    %v2399 = vsub.s32 0, %v2398
    %v2400 = vrot.slane %v2395, %v2399
    %v2418 = vunpack.c.l.b16 %v2379
    %v2419 = vunpack.c.l.b16 %v2380
    %v2420 = vunpack.c.l.b16 %v2381
    %v2421 = vunpack.c.l.b16 %v2382
    %v2422 = vunpack.c.l.b16 %v2383
    %v2423 = vunpack.c.l.b16 %v2384
    %v2424 = vunpack.c.l.b16 %v2385
    %v2425 = vunpack.c.l.b16 %v2386
    %v2426 = vunpack.c.l.b16 %v2387
    %v2427 = vunpack.c.l.b16 %v2388
    %v2428 = vunpack.c.l.b16 %v2389
    %v2429 = vunpack.c.l.b16 %v2390
    %v2430 = vunpack.c.l.b16 %v2391
    %v2431 = vunpack.c.l.b16 %v2392
    %v2432 = vunpack.c.l.b16 %v2393
    %v2433 = vunpack.c.l.b16 %v2394
    %v2434 = vpack.c.b16 %v2419, %v2418
    %v2435 = vpack.c.b16 %v2421, %v2420
    %v2436 = vpack.c.b16 %v2423, %v2422
    %v2437 = vpack.c.b16 %v2425, %v2424
    %v2438 = vpack.c.b16 %v2427, %v2426
    %v2439 = vpack.c.b16 %v2429, %v2428
    %v2440 = vpack.c.b16 %v2431, %v2430
    %v2441 = vpack.c.b16 %v2433, %v2432
    %2450 = vmatprep.subr.bf16.mxu0 0
    %2451 = vmatpush1.bf16.msra.mxu0 %v2441
    %2452 = vmatprep.subr.bf16.mxu0 0
    %2453 = vmatpush1.bf16.msra.mxu0 %v2440
    %2454 = vmatprep.subr.bf16.mxu0 0
    %2455 = vmatpush1.bf16.msra.mxu0 %v2439
    %2456 = vmatprep.subr.bf16.mxu0 0
    %2457 = vmatpush1.bf16.msra.mxu0 %v2438
    %2458 = vmatprep.subr.bf16.mxu0 0
    %2459 = vmatpush1.bf16.msra.mxu0 %v2437
    %2460 = vmatprep.subr.bf16.mxu0 0
    %2461 = vmatpush1.bf16.msra.mxu0 %v2436
    %2462 = vmatprep.subr.bf16.mxu0 0
    %2463 = vmatpush1.bf16.msra.mxu0 %v2435
    %2464 = vmatprep.subr.bf16.mxu0 0
    %2465 = vmatpush1.bf16.msra.mxu0 %v2434
    %2466 = vmatprep.subr.bf16.mxu0 0
    %2467 = vmatpush2.bf16.msra.mxu0 0
    %2468 = vmatprep.subr.bf16.mxu0 0
    %2469 = vmatpush2.bf16.msra.mxu0 0
    %2470 = vmatprep.subr.bf16.mxu0 0
    %2471 = vmatpush2.bf16.msra.mxu0 0
    %2472 = vmatprep.subr.bf16.mxu0 0
    %2473 = vmatpush2.bf16.msra.mxu0 0
    %2474 = vmatprep.subr.bf16.mxu0 0
    %2475 = vmatpush2.bf16.msra.mxu0 0
    %2476 = vmatprep.subr.bf16.mxu0 0
    %2477 = vmatpush2.bf16.msra.mxu0 0
    %2478 = vmatprep.subr.bf16.mxu0 0
    %2479 = vmatpush2.bf16.msra.mxu0 0
    %2480 = vmatprep.subr.bf16.mxu0 0
    %2481 = vmatpush2.bf16.msra.mxu0 0
    %2482 = vmatprep.mubr.bf16.mxu0 0
    %2483 = vmatmul.mubr.bf16.gmra.mxu0 %v2378
    %v2484 = vpop.f32.mrf.mxu0
    %v2485 = vadd.f32 %v2400, %v2484
    %v2486 = vpop.f32.mrf.mxu0
    %v2487 = vpop.f32.mrf.mxu0
    %v2488 = vpop.f32.mrf.mxu0
    %2489 = vdwg.mxu0
    %v2490 = vmax.f32 %v2485, 0.0
    %v2491 = vpack.c.bf16 %v2490, %v2490
    %v2492 = vld [vmem:[%s5] sm:$0xf]
    %v2493 = vld [vmem:[%s5 + $0x4] sm:$0xf]
    %v2494 = vld [vmem:[%s5 + $0x8] sm:$0xf]
    %v2495 = vld [vmem:[%s5 + $0xc] sm:$0xf]
    %v2496 = vld [vmem:[%s5 + $0x10] sm:$0xf]
    %v2497 = vld [vmem:[%s5 + $0x14] sm:$0xf]
    %v2498 = vld [vmem:[%s5 + $0x18] sm:$0xf]
    %v2499 = vld [vmem:[%s5 + $0x1c] sm:$0xf]
    %v2500 = vld [vmem:[%s6] sm:$0x1]
    %v2502 = vlaneseq
    %v2503 = vshrl.u32 %v2502, 7
    %v2504 = vsub.s32 0, %v2503
    %v2505 = vrot.slane %v2500, %v2504
    %v2515 = vunpack.c.l.b16 %v2492
    %v2516 = vunpack.c.l.b16 %v2493
    %v2517 = vunpack.c.l.b16 %v2494
    %v2518 = vunpack.c.l.b16 %v2495
    %v2519 = vunpack.c.l.b16 %v2496
    %v2520 = vunpack.c.l.b16 %v2497
    %v2521 = vunpack.c.l.b16 %v2498
    %v2522 = vunpack.c.l.b16 %v2499
    %v2523 = vpack.c.b16 %v2516, %v2515
    %v2524 = vpack.c.b16 %v2518, %v2517
    %v2525 = vpack.c.b16 %v2520, %v2519
    %v2526 = vpack.c.b16 %v2522, %v2521
    %vm2531 = vcmask 523264
    %v2533 = vsel %vm2531, %v2491, 0
    %2535 = vmatprep.subr.bf16.mxu0 0
    %2536 = vmatpush1.bf16.msra.mxu0 0
    %2537 = vmatprep.subr.bf16.mxu0 0
    %2538 = vmatpush1.bf16.msra.mxu0 0
    %2539 = vmatprep.subr.bf16.mxu0 0
    %2540 = vmatpush1.bf16.msra.mxu0 0
    %2541 = vmatprep.subr.bf16.mxu0 0
    %2542 = vmatpush1.bf16.msra.mxu0 0
    %2543 = vmatprep.subr.bf16.mxu0 0
    %2544 = vmatpush1.bf16.msra.mxu0 %v2526
    %2545 = vmatprep.subr.bf16.mxu0 0
    %2546 = vmatpush1.bf16.msra.mxu0 %v2525
    %2547 = vmatprep.subr.bf16.mxu0 0
    %2548 = vmatpush1.bf16.msra.mxu0 %v2524
    %2549 = vmatprep.subr.bf16.mxu0 0
    %2550 = vmatpush1.bf16.msra.mxu0 %v2523
    %2551 = vmatprep.subr.bf16.mxu0 0
    %2552 = vmatpush2.bf16.msra.mxu0 0
    %2553 = vmatprep.subr.bf16.mxu0 0
    %2554 = vmatpush2.bf16.msra.mxu0 0
    %2555 = vmatprep.subr.bf16.mxu0 0
    %2556 = vmatpush2.bf16.msra.mxu0 0
    %2557 = vmatprep.subr.bf16.mxu0 0
    %2558 = vmatpush2.bf16.msra.mxu0 0
    %2559 = vmatprep.subr.bf16.mxu0 0
    %2560 = vmatpush2.bf16.msra.mxu0 0
    %2561 = vmatprep.subr.bf16.mxu0 0
    %2562 = vmatpush2.bf16.msra.mxu0 0
    %2563 = vmatprep.subr.bf16.mxu0 0
    %2564 = vmatpush2.bf16.msra.mxu0 0
    %2565 = vmatprep.subr.bf16.mxu0 0
    %2566 = vmatpush2.bf16.msra.mxu0 0
    %2567 = vmatprep.mubr.bf16.mxu0 0
    %2568 = vmatmul.mubr.bf16.gmra.mxu0 %v2533
    %v2569 = vpop.f32.mrf.mxu0
    %v2570 = vadd.f32 %v2505, %v2569
    %v2571 = vpop.f32.mrf.mxu0
    %v2572 = vpop.f32.mrf.mxu0
    %v2573 = vpop.f32.mrf.mxu0
    %2574 = vdwg.mxu0
    %2575 = vst [vmem:[#allocation5] sm:$0xff] %v2570
    // Predicated region
    $region34: #{tpu_custom_call.1} parent=1 // pred_check
      _
    $region35: #{tpu_custom_call.1} parent=1 // pred_check_branch
      %2577 = sbr.rel (0) target = $region37
    $region36: #{tpu_custom_call.1} parent=1 // pred_region
      %s2579 = ssub.s32 128, 32
      %2580 = vsyncadd [#allocation4], %s2579
      %s2581 = sshll.u32 [#allocation5], 4
      %s2582 = int_to_ptr.vmem [resolvable:$true] %s2581
      %2587 = dma.vmem_to_hbm [thread:$0]  %s2582, 32, %s7, [#allocation4], 32, 32, 2
    $region37: #{tpu_custom_call.1} parent=1 // pred_fallthru
      _
    // Predicated region
    $region38: #{tpu_custom_call.1} parent=1 // pred_check
      _
    $region39: #{tpu_custom_call.1} parent=1 // pred_check_branch
      %2589 = sbr.rel (0) target = $region41
    $region40: #{tpu_custom_call.1} parent=1 // pred_region
      %2590 = dma.done [#allocation4], 128
    $region41: #{tpu_custom_call.1} parent=1 // pred_fallthru
      _
    %2591 = vsyncpa [#allocation3], 1
    %2592 = vsyncpa [#allocation4], 1

</llo_original>
